<compile_context>
chip_gen: v7x
topology: tpu7x:2x2x1
jax: 0.10.0
libtpu: 0.0.40
codegen_flags: <defaults>
</compile_context>

<pallas_src>
import functools

import jax
import jax.numpy as jnp
from jax import lax
from jax.experimental import pallas as pl
from jax.experimental.pallas import tpu as pltpu

RMS_EPS = 1e-8  # mmfreelm BitLinear uses RMSNorm(in_features, eps=1e-8)


# ----------------------------------------------------------------------------
# Parameter-prep glue (plain JAX): BitNet ternary weight quantization.
#   scale = 1 / clamp(mean(|w|), 1e-5)
#   w_int = clip(round(w*scale), -1, 1)   (kept as int8; dequant = w_int/scale)
# ----------------------------------------------------------------------------
def quantize_weight_int8(w):
    """Returns (int8 weight with values {-1,0,1}, scalar f32 dequant scale)."""
    scale = 1.0 / jnp.maximum(jnp.mean(jnp.abs(w)), 1e-5)
    w_int = jnp.clip(jnp.round(w * scale), -1.0, 1.0).astype(jnp.int8)
    return w_int, (1.0 / scale).astype(jnp.float32)


# ----------------------------------------------------------------------------
# Pallas kernel: full BitMLP for one block of tokens, weights streamed in tiles.
# Grid axis 1 has length 2*nJ: j in [0, nJ) is the gate_proj N-sweep + swiglu,
# j in [nJ, 2*nJ) is the down_proj K-sweep.
# ----------------------------------------------------------------------------
def _bit_mlp_kernel(
    x_ref, wgg_ref, wgu_ref, wd_ref, gnw_ref, dnw_ref, scales_ref,   # inputs
    o_ref,                                                           # output
    xq_sc, m1_sc, h_sc, hq_sc, m2_sc, acc_sc,                        # scratch
    *, n_tiles):
    j = pl.program_id(1)
    nJ = n_tiles

    # --- once per token block: RMSNorm(x)*w -> per-row int act-quant; zero acc
    @pl.when(j == 0)
    def _():
        x = x_ref[...].astype(jnp.float32)
        xn = x * lax.rsqrt(jnp.mean(x * x, axis=-1, keepdims=True) + RMS_EPS)
        xn = xn * gnw_ref[...].astype(jnp.float32)
        m1 = jnp.maximum(jnp.max(jnp.abs(xn), axis=-1, keepdims=True), 1e-5)
        # Integer-valued activations (|v| <= 128) are exact in bf16.
        xq_sc[...] = jnp.clip(jnp.round(xn * (127.0 / m1)),
                              -128.0, 127.0).astype(jnp.bfloat16)
        m1_sc[...] = m1
        acc_sc[...] = jnp.zeros_like(acc_sc)

    # --- phase 1: one N-tile of gate_proj + swiglu -> h scratch tile j
    @pl.when(j < nJ)
    def _():
        xq = xq_sc[...]
        # Fused dequant: per-row (m1/127) * scalar weight scale applied to the
        # tile as it is consumed (no separate full-slab scale pass).
        c1 = m1_sc[...] * scales_ref[0]
        g = jnp.dot(xq, wgg_ref[...].astype(jnp.bfloat16),
                    preferred_element_type=jnp.float32) * c1
        u = jnp.dot(xq, wgu_ref[...].astype(jnp.bfloat16),
                    preferred_element_type=jnp.float32) * c1
        h_sc[j] = g * jax.nn.sigmoid(g) * u                  # silu(gate) * up

    # --- end of phase 1: RMSNorm(h)*w over the full intermediate dim + quant
    @pl.when(j == nJ - 1)
    def _():
        h = h_sc[...]                                        # (nJ, bm, bn) f32
        inter = h.shape[0] * h.shape[2]
        ssq = jnp.sum(h * h, axis=2, keepdims=True)          # (nJ, bm, 1)
        ssq = jnp.sum(ssq, axis=0, keepdims=True)            # (1, bm, 1)
        hn = h * lax.rsqrt(ssq / inter + RMS_EPS) * dnw_ref[...].astype(jnp.float32)
        m2 = jnp.max(jnp.abs(hn), axis=2, keepdims=True)
        m2 = jnp.maximum(jnp.max(m2, axis=0, keepdims=True), 1e-5)   # (1, bm, 1)
        hq_sc[...] = jnp.clip(jnp.round(hn * (127.0 / m2)),
                              -128.0, 127.0).astype(jnp.bfloat16)
        m2_sc[...] = m2[0]                                   # (bm, 1)

    # --- phase 2: one K-tile of down_proj accumulated in f32
    @pl.when(j >= nJ)
    def _():
        k = j - nJ
        acc_sc[...] += jnp.dot(hq_sc[k], wd_ref[...].astype(jnp.bfloat16),
                               preferred_element_type=jnp.float32)

    # --- finalize: dequant scale fused into the output cast/store
    @pl.when(j == 2 * nJ - 1)
    def _():
        o_ref[...] = (acc_sc[...] * (m2_sc[...] * scales_ref[1])).astype(o_ref.dtype)


def _default_vmem_limit_bytes():
    """3/4 of this chip's physical VMEM, capped; falls back to 48 MiB."""
    try:
        cap = int(pltpu.get_tpu_info().vmem_capacity_bytes)
        return min(3 * cap // 4, 112 * 1024 * 1024)
    except Exception:
        return 48 * 1024 * 1024


def bit_mlp(x, wg_gate_int8, wg_up_int8, wd_int8, g_norm_w, d_norm_w,
            wg_scale, wd_scale, *, block_m=128, block_n=512, out_dtype=None):
    """x: (T, H) float; wg_gate/up_int8: (H, I) int8; wd_int8: (I, H) int8;
    norm weights: (1, H) and (1, I); w*_scale: scalar dequant scales.
    Pass out_dtype=jnp.bfloat16 if the surrounding model is bf16."""
    T, H = x.shape
    I = wg_gate_int8.shape[1]
    assert wg_gate_int8.shape == (H, I) and wg_up_int8.shape == (H, I)
    assert wd_int8.shape == (I, H)
    block_n = min(block_n, I)
    assert block_n % 128 == 0 and I % block_n == 0, \
        "intermediate tile must be lane-aligned and divide intermediate_size"
    nJ = I // block_n
    out_dtype = x.dtype if out_dtype is None else out_dtype

    # Deferred dequant scales: the per-row act scale is applied in-kernel as
    # m/127, so the remaining scalar factor is w_scale/127 per matmul.
    scales = jnp.stack([jnp.asarray(wg_scale), jnp.asarray(wd_scale)]
                       ).astype(jnp.float32) / 127.0                    # (2,)
    gnw = g_norm_w.reshape(1, H).astype(jnp.float32)
    dnw3 = d_norm_w.reshape(nJ, 1, block_n).astype(jnp.float32)         # per-tile layout

    # No host-side padding: grid covers the tail block; garbage rows are
    # row-local through rmsnorm/quant/matmul and masked on the final store.
    grid = (pl.cdiv(T, block_m), 2 * nJ)
    kernel = functools.partial(_bit_mlp_kernel, n_tiles=nJ)

    return pl.pallas_call(
        kernel,
        out_shape=jax.ShapeDtypeStruct((T, H), out_dtype),
        grid_spec=pltpu.PrefetchScalarGridSpec(
            num_scalar_prefetch=0,
            grid=grid,
            in_specs=[
                # x tile: resident across the whole j sweep of a token block.
                pl.BlockSpec((block_m, H), lambda i, j: (i, 0)),
                # gate_proj weight halves, streamed as N-tiles during phase 1
                # (index clamps to the last tile during phase 2 -> no re-DMA).
                pl.BlockSpec((H, block_n), lambda i, j: (0, jnp.minimum(j, nJ - 1))),
                pl.BlockSpec((H, block_n), lambda i, j: (0, jnp.minimum(j, nJ - 1))),
                # down_proj weight, streamed as K-tiles during phase 2.
                pl.BlockSpec((block_n, H), lambda i, j: (jnp.maximum(j - nJ, 0), 0)),
                # Grid-invariant RMSNorm weights: single-buffered.
                pl.BlockSpec((1, H), lambda i, j: (0, 0),
                             pipeline_mode=pl.Buffered(1)),
                pl.BlockSpec((nJ, 1, block_n), lambda i, j: (0, 0, 0),
                             pipeline_mode=pl.Buffered(1)),
                # (2,) dequant scales in SMEM.
                pl.BlockSpec(memory_space=pltpu.MemorySpace.SMEM),
            ],
            out_specs=pl.BlockSpec((block_m, H), lambda i, j: (i, 0)),
            scratch_shapes=[
                pltpu.VMEM((block_m, H), jnp.bfloat16),            # xq (quantized x)
                pltpu.VMEM((block_m, 1), jnp.float32),             # m1
                pltpu.VMEM((nJ, block_m, block_n), jnp.float32),   # h  (swiglu output)
                pltpu.VMEM((nJ, block_m, block_n), jnp.bfloat16),  # hq (quantized h)
                pltpu.VMEM((block_m, 1), jnp.float32),             # m2
                pltpu.VMEM((block_m, H), jnp.float32),             # down_proj accumulator
            ],
        ),
        compiler_params=pltpu.CompilerParams(
            dimension_semantics=("parallel", "arbitrary"),
            vmem_limit_bytes=_default_vmem_limit_bytes(),
        ),
    )(x, wg_gate_int8, wg_up_int8, wd_int8, gnw, dnw3, scales)


# ----------------------------------------------------------------------------
# Pure-JAX reference (PyTorch BitLinear semantics: dequant-before-matmul, f32).
# ----------------------------------------------------------------------------
def _ref(x, wg_int8_t, wd_int8_t, gnw, dnw, wg_scale, wd_scale):
    wg = wg_int8_t.astype(jnp.float32) * wg_scale
    wd = wd_int8_t.astype(jnp.float32) * wd_scale

    def bitlinear(v, w, nw):
        vn = v * lax.rsqrt(jnp.mean(v * v, axis=-1, keepdims=True) + RMS_EPS) * nw
        s = 127.0 / jnp.maximum(jnp.max(jnp.abs(vn), axis=-1, keepdims=True), 1e-5)
        vq = jnp.clip(jnp.round(vn * s), -128.0, 127.0) / s
        return jnp.dot(vq, w, precision=lax.Precision.HIGHEST)

    y = bitlinear(x, wg, gnw)
    gate, up = jnp.split(y, 2, axis=-1)
    h = gate * jax.nn.sigmoid(gate) * up
    return bitlinear(h, wd, dnw)


if __name__ == "__main__":
    # Config: hidden_size=32, hidden_ratio=4 -> intermediate = 256*ceil(int(32*4*2/3)/256) = 256
    hidden_size = 32
    hidden_ratio = 4
    inter = int(hidden_size * hidden_ratio * 2 / 3)
    intermediate_size = 256 * ((inter + 256 - 1) // 256)      # 256

    batch, seq = 2, 8
    key = jax.random.PRNGKey(0)
    kx, kg, kd = jax.random.split(key, 3)

    x = jax.random.normal(kx, (batch, seq, hidden_size), dtype=jnp.float32)

    # nn.Linear-style weights (out, in); RMSNorm weights init to 1.
    wg_raw = jax.random.normal(kg, (intermediate_size * 2, hidden_size), jnp.float32) * 0.05
    wd_raw = jax.random.normal(kd, (hidden_size, intermediate_size), jnp.float32) * 0.05
    g_norm_w = jnp.ones((1, hidden_size), jnp.float32)
    d_norm_w = jnp.ones((1, intermediate_size), jnp.float32)

    # Ternary weight quantization (host-side parameter prep), then transpose to
    # (in, out) and split gate_proj into its gate / up halves for streaming.
    wg_int8, wg_scale = quantize_weight_int8(wg_raw)          # (2I, H) int8
    wd_int8, wd_scale = quantize_weight_int8(wd_raw)          # (H, I)  int8
    wg_int8_t = wg_int8.T                                     # (H, 2I)
    wd_int8_t = wd_int8.T                                     # (I, H)
    wg_gate = wg_int8_t[:, :intermediate_size]                # (H, I)
    wg_up = wg_int8_t[:, intermediate_size:]                  # (H, I)

    x2d = x.reshape(batch * seq, hidden_size)                 # (T, H)

    # block_n=128 exercises the multi-tile streaming path (nJ=2) at toy size.
    out = bit_mlp(x2d, wg_gate, wg_up, wd_int8_t, g_norm_w, d_norm_w,
                  wg_scale, wd_scale, block_m=128, block_n=128)
    out = jax.block_until_ready(out).reshape(batch, seq, hidden_size)

    ref = _ref(x2d, wg_int8_t, wd_int8_t, g_norm_w, d_norm_w,
               wg_scale, wd_scale).reshape(batch, seq, hidden_size)

    # Tolerance note: the kernel's matmuls are exact (integer-valued bf16 with
    # f32 accumulation; partial sums << 2^24) and the deferred scales are
    # mathematically identical to the reference, but fake-quant round() is
    # boundary-sensitive: a ~1e-6 relative difference in the pre-quant
    # activation can shift one code level, which propagates to ~1e-3 in a
    # handful of outputs.  allclose is therefore set above one quantization
    # LSB; the median-error check confirms the bulk of outputs match to noise.
    diff = jnp.abs(out - ref)
    assert jnp.allclose(out, ref, atol=1e-2, rtol=1e-2), "kernel mismatch vs reference"
    assert jnp.median(diff) < 1e-4, "kernel systematically differs from reference"

    print("KERNEL_OK")
</pallas_src>

<mosaic_0001>
module attributes {stable_mosaic.version = 11 : i64} {
  func.func @_bit_mlp_kernel(%arg0: i32, %arg1: i32, %arg2: memref<128x32xf32, #tpu.memory_space<vmem>>, %arg3: memref<32x128xi8, #tpu.memory_space<vmem>>, %arg4: memref<32x128xi8, #tpu.memory_space<vmem>>, %arg5: memref<128x32xi8, #tpu.memory_space<vmem>>, %arg6: memref<1x32xf32, #tpu.memory_space<vmem>>, %arg7: memref<2x1x128xf32, #tpu.memory_space<vmem>>, %arg8: memref<2xf32, #tpu.memory_space<smem>>, %arg9: memref<128x32xf32, #tpu.memory_space<vmem>>, %arg10: memref<128x32xbf16, #tpu.memory_space<vmem>>, %arg11: memref<128x1xf32, #tpu.memory_space<vmem>>, %arg12: memref<2x128x128xf32, #tpu.memory_space<vmem>>, %arg13: memref<2x128x128xbf16, #tpu.memory_space<vmem>>, %arg14: memref<128x1xf32, #tpu.memory_space<vmem>>, %arg15: memref<128x32xf32, #tpu.memory_space<vmem>>) attributes {dimension_semantics = [#tpu.dimension_semantics<parallel>, #tpu.dimension_semantics<arbitrary>], iteration_bounds = array<i64: 1, 4>, scalar_prefetch = 0 : i64, scratch_operands = 6 : i64, tpu.core_type = #tpu.core_type<tc>, window_params = [{transform_indices = @transform_0, window_bounds = array<i64: 128, 32>}, {transform_indices = @transform_1, window_bounds = array<i64: 32, 128>}, {transform_indices = @transform_2, window_bounds = array<i64: 32, 128>}, {transform_indices = @transform_3, window_bounds = array<i64: 128, 32>}, {pipeline_mode = #tpu.pipeline_mode<synchronous>, transform_indices = @transform_4, window_bounds = array<i64: 1, 32>}, {pipeline_mode = #tpu.pipeline_mode<synchronous>, transform_indices = @transform_5, window_bounds = array<i64: 2, 1, 128>}, {transform_indices = @transform_6, window_bounds = array<i64: 2>}, {transform_indices = @transform_7, window_bounds = array<i64: 128, 32>}]} {
    %c0_i32 = arith.constant 0 : i32
    %0 = arith.cmpi eq, %arg1, %c0_i32 : i32
    %1 = arith.extui %0 : i1 to i32
    %c0_i32_0 = arith.constant 0 : i32
    %2 = arith.cmpi ne, %1, %c0_i32_0 : i32
    scf.if %2 {
      %c0 = arith.constant 0 : index
      %c0_6 = arith.constant 0 : index
      %15 = vector.load %arg2[%c0, %c0_6] : memref<128x32xf32, #tpu.memory_space<vmem>>, vector<128x32xf32>
      %16 = arith.mulf %15, %15 : vector<128x32xf32>
      %cst = arith.constant dense<0.000000e+00> : vector<128xf32>
      %17 = vector.multi_reduction <add>, %16, %cst [1] : vector<128x32xf32> to vector<128xf32>
      %18 = vector.shape_cast %17 : vector<128xf32> to vector<128x1xf32>
      %cst_7 = arith.constant 3.200000e+01 : f32
      %19 = vector.broadcast %cst_7 : f32 to vector<128x1xf32>
      %20 = arith.divf %18, %19 : vector<128x1xf32>
      %cst_8 = arith.constant 9.99999993E-9 : f32
      %21 = vector.broadcast %cst_8 : f32 to vector<128x1xf32>
      %22 = arith.addf %20, %21 : vector<128x1xf32>
      %23 = math.rsqrt %22 : vector<128x1xf32>
      %24 = vector.broadcast %23 : vector<128x1xf32> to vector<128x32xf32>
      %25 = arith.mulf %15, %24 : vector<128x32xf32>
      %c0_9 = arith.constant 0 : index
      %c0_10 = arith.constant 0 : index
      %26 = vector.load %arg6[%c0_9, %c0_10] : memref<1x32xf32, #tpu.memory_space<vmem>>, vector<1x32xf32>
      %27 = vector.broadcast %26 : vector<1x32xf32> to vector<128x32xf32>
      %28 = arith.mulf %25, %27 : vector<128x32xf32>
      %29 = math.absf %28 : vector<128x32xf32>
      %cst_11 = arith.constant dense<0xFF800000> : vector<128xf32>
      %30 = vector.multi_reduction <maximumf>, %29, %cst_11 [1] : vector<128x32xf32> to vector<128xf32>
      %31 = vector.shape_cast %30 : vector<128xf32> to vector<128x1xf32>
      %cst_12 = arith.constant 9.99999974E-6 : f32
      %32 = vector.broadcast %cst_12 : f32 to vector<128x1xf32>
      %33 = arith.maximumf %31, %32 : vector<128x1xf32>
      %cst_13 = arith.constant 1.270000e+02 : f32
      %34 = vector.broadcast %cst_13 : f32 to vector<128x1xf32>
      %35 = arith.divf %34, %33 : vector<128x1xf32>
      %36 = vector.broadcast %35 : vector<128x1xf32> to vector<128x32xf32>
      %37 = arith.mulf %28, %36 : vector<128x32xf32>
      %38 = math.roundeven %37 : vector<128x32xf32>
      %cst_14 = arith.constant -1.280000e+02 : f32
      %cst_15 = arith.constant 1.270000e+02 : f32
      %39 = vector.broadcast %cst_14 : f32 to vector<128x32xf32>
      %40 = arith.maximumf %39, %38 : vector<128x32xf32>
      %41 = vector.broadcast %cst_15 : f32 to vector<128x32xf32>
      %42 = arith.minimumf %41, %40 : vector<128x32xf32>
      %43 = arith.truncf %42 : vector<128x32xf32> to vector<128x32xbf16>
      %c0_16 = arith.constant 0 : index
      %c0_17 = arith.constant 0 : index
      %44 = vector.load %arg10[%c0_16, %c0_17] : memref<128x32xbf16, #tpu.memory_space<vmem>>, vector<128x32xbf16>
      tpu.vector_store %arg10[%c0_16, %c0_17], %43 {strides = array<i32>} : memref<128x32xbf16, #tpu.memory_space<vmem>>, vector<128x32xbf16>,
      %c0_18 = arith.constant 0 : index
      %c0_19 = arith.constant 0 : index
      %45 = vector.load %arg11[%c0_18, %c0_19] : memref<128x1xf32, #tpu.memory_space<vmem>>, vector<128x1xf32>
      tpu.vector_store %arg11[%c0_18, %c0_19], %33 {strides = array<i32>} : memref<128x1xf32, #tpu.memory_space<vmem>>, vector<128x1xf32>,
      %cst_20 = arith.constant 0.000000e+00 : f32
      %46 = vector.broadcast %cst_20 : f32 to vector<128x32xf32>
      %c0_21 = arith.constant 0 : index
      %c0_22 = arith.constant 0 : index
      %47 = vector.load %arg15[%c0_21, %c0_22] : memref<128x32xf32, #tpu.memory_space<vmem>>, vector<128x32xf32>
      tpu.vector_store %arg15[%c0_21, %c0_22], %46 {strides = array<i32>} : memref<128x32xf32, #tpu.memory_space<vmem>>, vector<128x32xf32>,
    } else {
    }
    %c2_i32 = arith.constant 2 : i32
    %3 = arith.cmpi slt, %arg1, %c2_i32 : i32
    %4 = arith.extui %3 : i1 to i32
    %c0_i32_1 = arith.constant 0 : i32
    %5 = arith.cmpi ne, %4, %c0_i32_1 : i32
    scf.if %5 {
      %c0 = arith.constant 0 : index
      %c0_6 = arith.constant 0 : index
      %15 = vector.load %arg10[%c0, %c0_6] : memref<128x32xbf16, #tpu.memory_space<vmem>>, vector<128x32xbf16>
      %c0_7 = arith.constant 0 : index
      %c0_8 = arith.constant 0 : index
      %16 = vector.load %arg11[%c0_7, %c0_8] : memref<128x1xf32, #tpu.memory_space<vmem>>, vector<128x1xf32>
      %c0_9 = arith.constant 0 : index
      %17 = memref.load %arg8[%c0_9] : memref<2xf32, #tpu.memory_space<smem>>
      %18 = vector.broadcast %17 : f32 to vector<128x1xf32>
      %19 = arith.mulf %16, %18 : vector<128x1xf32>
      %c0_10 = arith.constant 0 : index
      %c0_11 = arith.constant 0 : index
      %20 = vector.load %arg3[%c0_10, %c0_11] : memref<32x128xi8, #tpu.memory_space<vmem>>, vector<32x128xi8>
      %21 = arith.sitofp %20 : vector<32x128xi8> to vector<32x128xbf16>
      %cst = arith.constant dense<0.000000e+00> : vector<128x128xf32>
      %22 = tpu.matmul %15, %21, %cst {dimension_numbers = #tpu.dot_dimension_numbers<[1], [0], [0], [1], [0, 0, 1, 1], [], []>} : vector<128x32xbf16>, vector<32x128xbf16>, vector<128x128xf32> -> vector<128x128xf32>
      %23 = vector.broadcast %19 : vector<128x1xf32> to vector<128x128xf32>
      %24 = arith.mulf %22, %23 : vector<128x128xf32>
      %c0_12 = arith.constant 0 : index
      %c0_13 = arith.constant 0 : index
      %25 = vector.load %arg4[%c0_12, %c0_13] : memref<32x128xi8, #tpu.memory_space<vmem>>, vector<32x128xi8>
      %26 = arith.sitofp %25 : vector<32x128xi8> to vector<32x128xbf16>
      %cst_14 = arith.constant dense<0.000000e+00> : vector<128x128xf32>
      %27 = tpu.matmul %15, %26, %cst_14 {dimension_numbers = #tpu.dot_dimension_numbers<[1], [0], [0], [1], [0, 0, 1, 1], [], []>} : vector<128x32xbf16>, vector<32x128xbf16>, vector<128x128xf32> -> vector<128x128xf32>
      %28 = vector.broadcast %19 : vector<128x1xf32> to vector<128x128xf32>
      %29 = arith.mulf %27, %28 : vector<128x128xf32>
      %30 = arith.negf %24 : vector<128x128xf32>
      %31 = math.exp %30 : vector<128x128xf32>
      %cst_15 = arith.constant 1.000000e+00 : f32
      %32 = vector.broadcast %cst_15 : f32 to vector<128x128xf32>
      %33 = arith.addf %32, %31 : vector<128x128xf32>
      %34 = arith.divf %32, %33 : vector<128x128xf32>
      %35 = arith.mulf %24, %34 : vector<128x128xf32>
      %36 = arith.mulf %35, %29 : vector<128x128xf32>
      %37 = arith.index_cast %arg1 : i32 to index
      %c0_16 = arith.constant 0 : index
      %c0_17 = arith.constant 0 : index
      %38 = vector.load %arg12[%37, %c0_16, %c0_17] : memref<2x128x128xf32, #tpu.memory_space<vmem>>, vector<1x128x128xf32>
      %39 = vector.shape_cast %38 : vector<1x128x128xf32> to vector<128x128xf32>
      %40 = vector.shape_cast %36 : vector<128x128xf32> to vector<1x128x128xf32>
      tpu.vector_store %arg12[%37, %c0_16, %c0_17], %40 {strides = array<i32>} : memref<2x128x128xf32, #tpu.memory_space<vmem>>, vector<1x128x128xf32>,
    } else {
    }
    %c1_i32 = arith.constant 1 : i32
    %6 = arith.cmpi eq, %arg1, %c1_i32 : i32
    %7 = arith.extui %6 : i1 to i32
    %c0_i32_2 = arith.constant 0 : i32
    %8 = arith.cmpi ne, %7, %c0_i32_2 : i32
    scf.if %8 {
      %c0 = arith.constant 0 : index
      %c0_6 = arith.constant 0 : index
      %c0_7 = arith.constant 0 : index
      %15 = vector.load %arg12[%c0, %c0_6, %c0_7] : memref<2x128x128xf32, #tpu.memory_space<vmem>>, vector<2x128x128xf32>
      %16 = arith.mulf %15, %15 : vector<2x128x128xf32>
      %cst = arith.constant dense<0.000000e+00> : vector<2x128xf32>
      %17 = vector.multi_reduction <add>, %16, %cst [2] : vector<2x128x128xf32> to vector<2x128xf32>
      %18 = vector.shape_cast %17 : vector<2x128xf32> to vector<2x128x1xf32>
      %cst_8 = arith.constant dense<0.000000e+00> : vector<128x1xf32>
      %19 = vector.multi_reduction <add>, %18, %cst_8 [0] : vector<2x128x1xf32> to vector<128x1xf32>
      %20 = vector.shape_cast %19 : vector<128x1xf32> to vector<1x128x1xf32>
      %cst_9 = arith.constant 2.560000e+02 : f32
      %21 = vector.broadcast %cst_9 : f32 to vector<1x128x1xf32>
      %22 = arith.divf %20, %21 : vector<1x128x1xf32>
      %cst_10 = arith.constant 9.99999993E-9 : f32
      %23 = vector.broadcast %cst_10 : f32 to vector<1x128x1xf32>
      %24 = arith.addf %22, %23 : vector<1x128x1xf32>
      %25 = math.rsqrt %24 : vector<1x128x1xf32>
      %26 = vector.broadcast %25 : vector<1x128x1xf32> to vector<2x128x128xf32>
      %27 = arith.mulf %15, %26 : vector<2x128x128xf32>
      %c0_11 = arith.constant 0 : index
      %c0_12 = arith.constant 0 : index
      %c0_13 = arith.constant 0 : index
      %28 = vector.load %arg7[%c0_11, %c0_12, %c0_13] : memref<2x1x128xf32, #tpu.memory_space<vmem>>, vector<2x1x128xf32>
      %29 = vector.broadcast %28 : vector<2x1x128xf32> to vector<2x128x128xf32>
      %30 = arith.mulf %27, %29 : vector<2x128x128xf32>
      %31 = math.absf %30 : vector<2x128x128xf32>
      %cst_14 = arith.constant dense<0xFF800000> : vector<2x128xf32>
      %32 = vector.multi_reduction <maximumf>, %31, %cst_14 [2] : vector<2x128x128xf32> to vector<2x128xf32>
      %33 = vector.shape_cast %32 : vector<2x128xf32> to vector<2x128x1xf32>
      %cst_15 = arith.constant dense<0xFF800000> : vector<128x1xf32>
      %34 = vector.multi_reduction <maximumf>, %33, %cst_15 [0] : vector<2x128x1xf32> to vector<128x1xf32>
      %35 = vector.shape_cast %34 : vector<128x1xf32> to vector<1x128x1xf32>
      %cst_16 = arith.constant 9.99999974E-6 : f32
      %36 = vector.broadcast %cst_16 : f32 to vector<1x128x1xf32>
      %37 = arith.maximumf %35, %36 : vector<1x128x1xf32>
      %cst_17 = arith.constant 1.270000e+02 : f32
      %38 = vector.broadcast %cst_17 : f32 to vector<1x128x1xf32>
      %39 = arith.divf %38, %37 : vector<1x128x1xf32>
      %40 = vector.broadcast %39 : vector<1x128x1xf32> to vector<2x128x128xf32>
      %41 = arith.mulf %30, %40 : vector<2x128x128xf32>
      %42 = math.roundeven %41 : vector<2x128x128xf32>
      %cst_18 = arith.constant -1.280000e+02 : f32
      %cst_19 = arith.constant 1.270000e+02 : f32
      %43 = vector.broadcast %cst_18 : f32 to vector<2x128x128xf32>
      %44 = arith.maximumf %43, %42 : vector<2x128x128xf32>
      %45 = vector.broadcast %cst_19 : f32 to vector<2x128x128xf32>
      %46 = arith.minimumf %45, %44 : vector<2x128x128xf32>
      %47 = arith.truncf %46 : vector<2x128x128xf32> to vector<2x128x128xbf16>
      %c0_20 = arith.constant 0 : index
      %c0_21 = arith.constant 0 : index
      %c0_22 = arith.constant 0 : index
      %48 = vector.load %arg13[%c0_20, %c0_21, %c0_22] : memref<2x128x128xbf16, #tpu.memory_space<vmem>>, vector<2x128x128xbf16>
      tpu.vector_store %arg13[%c0_20, %c0_21, %c0_22], %47 {strides = array<i32>} : memref<2x128x128xbf16, #tpu.memory_space<vmem>>, vector<2x128x128xbf16>,
      %49 = vector.shape_cast %37 : vector<1x128x1xf32> to vector<128x1xf32>
      %c0_23 = arith.constant 0 : index
      %c0_24 = arith.constant 0 : index
      %50 = vector.load %arg14[%c0_23, %c0_24] : memref<128x1xf32, #tpu.memory_space<vmem>>, vector<128x1xf32>
      tpu.vector_store %arg14[%c0_23, %c0_24], %49 {strides = array<i32>} : memref<128x1xf32, #tpu.memory_space<vmem>>, vector<128x1xf32>,
    } else {
    }
    %c2_i32_3 = arith.constant 2 : i32
    %9 = arith.cmpi sge, %arg1, %c2_i32_3 : i32
    %10 = arith.extui %9 : i1 to i32
    %c0_i32_4 = arith.constant 0 : i32
    %11 = arith.cmpi ne, %10, %c0_i32_4 : i32
    scf.if %11 {
      %c2_i32_6 = arith.constant 2 : i32
      %15 = arith.subi %arg1, %c2_i32_6 : i32
      %c0 = arith.constant 0 : index
      %c0_7 = arith.constant 0 : index
      %16 = vector.load %arg15[%c0, %c0_7] : memref<128x32xf32, #tpu.memory_space<vmem>>, vector<128x32xf32>
      %17 = arith.index_cast %15 : i32 to index
      %c0_8 = arith.constant 0 : index
      %c0_9 = arith.constant 0 : index
      %18 = vector.load %arg13[%17, %c0_8, %c0_9] : memref<2x128x128xbf16, #tpu.memory_space<vmem>>, vector<1x128x128xbf16>
      %19 = vector.shape_cast %18 : vector<1x128x128xbf16> to vector<128x128xbf16>
      %c0_10 = arith.constant 0 : index
      %c0_11 = arith.constant 0 : index
      %20 = vector.load %arg5[%c0_10, %c0_11] : memref<128x32xi8, #tpu.memory_space<vmem>>, vector<128x32xi8>
      %21 = arith.sitofp %20 : vector<128x32xi8> to vector<128x32xbf16>
      %cst = arith.constant dense<0.000000e+00> : vector<128x32xf32>
      %22 = tpu.matmul %19, %21, %cst {dimension_numbers = #tpu.dot_dimension_numbers<[1], [0], [0], [1], [0, 0, 1, 1], [], []>} : vector<128x128xbf16>, vector<128x32xbf16>, vector<128x32xf32> -> vector<128x32xf32>
      %23 = arith.addf %16, %22 : vector<128x32xf32>
      %c0_12 = arith.constant 0 : index
      %c0_13 = arith.constant 0 : index
      %24 = vector.load %arg15[%c0_12, %c0_13] : memref<128x32xf32, #tpu.memory_space<vmem>>, vector<128x32xf32>
      tpu.vector_store %arg15[%c0_12, %c0_13], %23 {strides = array<i32>} : memref<128x32xf32, #tpu.memory_space<vmem>>, vector<128x32xf32>,
    } else {
    }
    %c3_i32 = arith.constant 3 : i32
    %12 = arith.cmpi eq, %arg1, %c3_i32 : i32
    %13 = arith.extui %12 : i1 to i32
    %c0_i32_5 = arith.constant 0 : i32
    %14 = arith.cmpi ne, %13, %c0_i32_5 : i32
    scf.if %14 {
      %c0 = arith.constant 0 : index
      %c0_6 = arith.constant 0 : index
      %15 = vector.load %arg15[%c0, %c0_6] : memref<128x32xf32, #tpu.memory_space<vmem>>, vector<128x32xf32>
      %c0_7 = arith.constant 0 : index
      %c0_8 = arith.constant 0 : index
      %16 = vector.load %arg14[%c0_7, %c0_8] : memref<128x1xf32, #tpu.memory_space<vmem>>, vector<128x1xf32>
      %c1 = arith.constant 1 : index
      %17 = memref.load %arg8[%c1] : memref<2xf32, #tpu.memory_space<smem>>
      %18 = vector.broadcast %17 : f32 to vector<128x1xf32>
      %19 = arith.mulf %16, %18 : vector<128x1xf32>
      %20 = vector.broadcast %19 : vector<128x1xf32> to vector<128x32xf32>
      %21 = arith.mulf %15, %20 : vector<128x32xf32>
      %c0_9 = arith.constant 0 : index
      %c0_10 = arith.constant 0 : index
      %22 = vector.load %arg9[%c0_9, %c0_10] : memref<128x32xf32, #tpu.memory_space<vmem>>, vector<128x32xf32>
      tpu.vector_store %arg9[%c0_9, %c0_10], %21 {strides = array<i32>} : memref<128x32xf32, #tpu.memory_space<vmem>>, vector<128x32xf32>,
    } else {
    }
    return
  }
  func.func @transform_0(%arg0: i32, %arg1: i32) -> (i32, i32) {
    %c0_i32 = arith.constant 0 : i32
    %c0_i32_0 = arith.constant 0 : i32
    return %arg0, %c0_i32 : i32, i32
  }
  func.func @transform_1(%arg0: i32, %arg1: i32) -> (i32, i32) {
    %c1_i32 = arith.constant 1 : i32
    %0 = arith.minsi %arg1, %c1_i32 : i32
    %c0_i32 = arith.constant 0 : i32
    %c0_i32_0 = arith.constant 0 : i32
    return %c0_i32, %0 : i32, i32
  }
  func.func @transform_2(%arg0: i32, %arg1: i32) -> (i32, i32) {
    %c1_i32 = arith.constant 1 : i32
    %0 = arith.minsi %arg1, %c1_i32 : i32
    %c0_i32 = arith.constant 0 : i32
    %c0_i32_0 = arith.constant 0 : i32
    return %c0_i32, %0 : i32, i32
  }
  func.func @transform_3(%arg0: i32, %arg1: i32) -> (i32, i32) {
    %c2_i32 = arith.constant 2 : i32
    %0 = arith.subi %arg1, %c2_i32 : i32
    %c0_i32 = arith.constant 0 : i32
    %1 = arith.maxsi %0, %c0_i32 : i32
    %c0_i32_0 = arith.constant 0 : i32
    %c0_i32_1 = arith.constant 0 : i32
    return %1, %c0_i32_0 : i32, i32
  }
  func.func @transform_4(%arg0: i32, %arg1: i32) -> (i32, i32) {
    %c0_i32 = arith.constant 0 : i32
    %c0_i32_0 = arith.constant 0 : i32
    %c0_i32_1 = arith.constant 0 : i32
    return %c0_i32, %c0_i32_0 : i32, i32
  }
  func.func @transform_5(%arg0: i32, %arg1: i32) -> (i32, i32, i32) {
    %c0_i32 = arith.constant 0 : i32
    %c0_i32_0 = arith.constant 0 : i32
    %c0_i32_1 = arith.constant 0 : i32
    %c0_i32_2 = arith.constant 0 : i32
    return %c0_i32, %c0_i32_0, %c0_i32_1 : i32, i32, i32
  }
  func.func @transform_6(%arg0: i32, %arg1: i32) -> i32 {
    %c0_i32 = arith.constant 0 : i32
    %c0_i32_0 = arith.constant 0 : i32
    return %c0_i32 : i32
  }
  func.func @transform_7(%arg0: i32, %arg1: i32) -> (i32, i32) {
    %c0_i32 = arith.constant 0 : i32
    %c0_i32_0 = arith.constant 0 : i32
    return %arg0, %c0_i32 : i32, i32
  }
}

</mosaic_0001>

<llo_original>
// kernel: tpu_custom_call.1
$region0: #{tpu_custom_call.1}
  #allocation0 [shape = 'u32[]', space=smem, size = 0x4, offset = 0x4, fixed_abs, tag = 'smem constant byte address 0x4 - core index']
  #allocation1 [shape = 'u32[144,128]{1,0:T(1,128)}', space=vmem, size = 0x12000, scoped, tag = 'internal scratch']
  #allocation2 [shape = 'bf16[128,32]{1,0:T(16,128)(2,1)}', space=vmem, size = 0x8000, scoped, tag = 'scratch operand']
  #allocation3 [shape = 'f32[128,1]{1,0:T(8,128)}', space=vmem, size = 0x10000, scoped, tag = 'scratch operand']
  #allocation4 [shape = 'f32[2,128,128]{2,1,0:T(8,128)}', space=vmem, size = 0x20000, scoped, tag = 'scratch operand']
  #allocation5 [shape = 'bf16[2,128,128]{2,1,0:T(16,128)(2,1)}', space=vmem, size = 0x10000, scoped, tag = 'scratch operand']
  #allocation6 [shape = 'f32[128,1]{1,0:T(8,128)}', space=vmem, size = 0x10000, scoped, tag = 'scratch operand']
  #allocation7 [shape = 'f32[128,32]{1,0:T(8,128)}', space=vmem, size = 0x10000, scoped, tag = 'scratch operand']
  %s0 = inlined_call_operand.vmem [shape: f32[16,32], index: 0, kind: input, shape index: {}]
  %s1 = inlined_call_operand.vmem [shape: s8[32,256], index: 1, kind: input, shape index: {}]
  %s2 = inlined_call_operand.vmem [shape: s8[32,256], index: 2, kind: input, shape index: {}]
  %s3 = inlined_call_operand.vmem [shape: s8[256,32], index: 3, kind: input, shape index: {}]
  %s4 = inlined_call_operand.vmem [shape: f32[1,32], index: 4, kind: input, shape index: {}]
  %s5 = inlined_call_operand.vmem [shape: f32[2,1,128], index: 5, kind: input, shape index: {}]
  %s6 = inlined_call_operand.vmem [shape: f32[2], index: 6, kind: input, shape index: {}]
  %s7 = inlined_call_operand.hbm [shape: f32[16,32], index: 7, kind: output, shape index: {}]
  %s8 = sld [smem:[#allocation0]]
  $region85: #{tpu_custom_call.1} parent=0
    _
  %s10 = ssub.s32 1, %s8
  %s11 = scalar_select 0, %s10, %s8
  $region1: #{tpu_custom_call.1} parent=0
    #allocation8 [shape = 'u8[512]{0}', space=smem, size = 0x200, scoped, tag = 'input window, operand 6, single buffered']
    #allocation9 [shape = 's32[2]{0}', space=sflag, size = 0x8, scoped, tag = 'scoped memory for tpu_custom_call.1']
    #allocation10 [shape = 's32[2]{0}', space=sflag, size = 0x8, scoped, tag = 'scoped memory for tpu_custom_call.1']
    #allocation11 [shape = 'u8[65536]{0}', space=vmem, size = 0x10000, scoped, tag = 'output window, operand 0, single buffered']
    %12 = vsyncpa [#allocation10], 0
    %13 = vsyncpa [#allocation9], 0
    loop: start=0, step=1, limit=6
    $region2: #{tpu_custom_call.1} parent=1 // loop_pre_header
      _
    $region3: #{tpu_custom_call.1} parent=1 // loop_header
      %s15 = sphi 0, %s19
      %p16 = scmp.ge.s32.totalorder %s15, 6
      %s22 = sphi 0, %s34
      %s23 = sphi 0, %s30
      %s24 = sphi 0, %s22
      %s25 = sphi 0, %s23
      %s26 = sphi 0, %s24
      %s27 = sphi 0, %s25
      %s37 = sphi 0, %s39
      %s40 = sphi 0, %s37
      %s41 = sphi 0, %s40
      %s57 = sphi 0, %s41
      %s67 = sphi 0, %s69
      %s70 = sphi 0, %s67
      %s71 = sphi 0, %s70
      %s87 = sphi 0, %s71
      %s97 = sphi 0, %s99
      %s100 = sphi 0, %s97
      %s101 = sphi 0, %s100
      %s117 = sphi 0, %s101
      %s129 = sphi 0, %s131
      %s132 = sphi 0, %s129
      %s133 = sphi 0, %s132
      %s149 = sphi 0, %s133
      %s153 = sphi 0, %s153
      %s155 = sphi 0, %s153
      %s156 = sphi 0, %s155
      %s170 = sphi 0, %s156
      %s174 = sphi 0, %s174
      %s176 = sphi 0, %s174
      %s177 = sphi 0, %s176
      %s191 = sphi 0, %s177
      %s195 = sphi 0, %s195
      %s197 = sphi 0, %s195
      %s198 = sphi 0, %s197
      %s212 = sphi 0, %s198
      %s218 = sphi 0, %s220
      %s221 = sphi 0, %s218
      %s222 = sphi 0, %s221
      %s238 = sphi 0, %s222
    $region4: #{tpu_custom_call.1} parent=1 // loop_header_branch
      %18 = sbr.rel (%p16) target = $region8
    $region5: #{tpu_custom_call.1} parent=1 // loop_body
      %s20 = ssub.s32 %s15, 1
      %s21 = ssub.s32 %s15, 2
      %s28 = sadd.s32 1, %s23
      %p29 = scmp.ge.s32.totalorder %s28, 4
      %s30 = scalar_select %p29, 0, %s28
      %s31 = sadd.s32 1, %s22
      %s32 = scalar_select %p29, %s31, %s22
      %p33 = scmp.ge.s32.totalorder %s32, 1
      %s34 = scalar_select %p33, 0, %s32
      %s35 = ssub.s32 %s22, %s34
      %p36 = scmp.eq.s32.totalorder %s35, 0
      %s38 = sadd.s32 %s37, 1
      %s39 = scalar_select %p36, %s37, %s38
      %p42 = pneg %p36
      %p43 = scmp.eq.s32.totalorder %s15, 3
      %p44 = por %p42, %p43
      %p45 = scmp.ne.s32.totalorder %s37, %s40
      %p46 = scmp.eq.s32.totalorder %s15, 0
      %p47 = por %p45, %p46
      %p48 = scmp.ne.s32.totalorder %s37, %s40
      %p49 = scmp.eq.s32.totalorder %s20, 3
      %p50 = por %p48, %p49
      %p51 = scmp.ne.s32.totalorder %s40, %s41
      %p52 = scmp.eq.s32.totalorder %s20, 0
      %p53 = por %p51, %p52
      %p54 = scmp.ne.s32.totalorder %s40, %s41
      %p55 = scmp.eq.s32.totalorder %s21, 3
      %p56 = por %p54, %p55
      %p58 = scmp.ne.s32.totalorder %s41, %s57
      %p59 = scmp.eq.s32.totalorder %s21, 0
      %p60 = por %p58, %p59
      %p61 = scmp.lt.s32.totalorder %s23, 1
      %s62 = scalar_select %p61, %s23, 1
      %p63 = scmp.lt.s32.totalorder %s30, 1
      %s64 = scalar_select %p63, %s30, 1
      %s65 = ssub.s32 %s62, %s64
      %p66 = scmp.eq.s32.totalorder %s65, 0
      %s68 = sadd.s32 %s67, 1
      %s69 = scalar_select %p66, %s67, %s68
      %p72 = pneg %p66
      %p73 = scmp.eq.s32.totalorder %s15, 3
      %p74 = por %p72, %p73
      %p75 = scmp.ne.s32.totalorder %s67, %s70
      %p76 = scmp.eq.s32.totalorder %s15, 0
      %p77 = por %p75, %p76
      %p78 = scmp.ne.s32.totalorder %s67, %s70
      %p79 = scmp.eq.s32.totalorder %s20, 3
      %p80 = por %p78, %p79
      %p81 = scmp.ne.s32.totalorder %s70, %s71
      %p82 = scmp.eq.s32.totalorder %s20, 0
      %p83 = por %p81, %p82
      %p84 = scmp.ne.s32.totalorder %s70, %s71
      %p85 = scmp.eq.s32.totalorder %s21, 3
      %p86 = por %p84, %p85
      %p88 = scmp.ne.s32.totalorder %s71, %s87
      %p89 = scmp.eq.s32.totalorder %s21, 0
      %p90 = por %p88, %p89
      %p91 = scmp.lt.s32.totalorder %s23, 1
      %s92 = scalar_select %p91, %s23, 1
      %p93 = scmp.lt.s32.totalorder %s30, 1
      %s94 = scalar_select %p93, %s30, 1
      %s95 = ssub.s32 %s92, %s94
      %p96 = scmp.eq.s32.totalorder %s95, 0
      %s98 = sadd.s32 %s97, 1
      %s99 = scalar_select %p96, %s97, %s98
      %p102 = pneg %p96
      %p103 = scmp.eq.s32.totalorder %s15, 3
      %p104 = por %p102, %p103
      %p105 = scmp.ne.s32.totalorder %s97, %s100
      %p106 = scmp.eq.s32.totalorder %s15, 0
      %p107 = por %p105, %p106
      %p108 = scmp.ne.s32.totalorder %s97, %s100
      %p109 = scmp.eq.s32.totalorder %s20, 3
      %p110 = por %p108, %p109
      %p111 = scmp.ne.s32.totalorder %s100, %s101
      %p112 = scmp.eq.s32.totalorder %s20, 0
      %p113 = por %p111, %p112
      %p114 = scmp.ne.s32.totalorder %s100, %s101
      %p115 = scmp.eq.s32.totalorder %s21, 3
      %p116 = por %p114, %p115
      %p118 = scmp.ne.s32.totalorder %s101, %s117
      %p119 = scmp.eq.s32.totalorder %s21, 0
      %p120 = por %p118, %p119
      %s121 = ssub.s32 %s23, 2
      %p122 = scmp.gt.s32.totalorder %s121, 0
      %s123 = scalar_select %p122, %s121, 0
      %s124 = ssub.s32 %s30, 2
      %p125 = scmp.gt.s32.totalorder %s124, 0
      %s126 = scalar_select %p125, %s124, 0
      %s127 = ssub.s32 %s123, %s126
      %p128 = scmp.eq.s32.totalorder %s127, 0
      %s130 = sadd.s32 %s129, 1
      %s131 = scalar_select %p128, %s129, %s130
      %p134 = pneg %p128
      %p135 = scmp.eq.s32.totalorder %s15, 3
      %p136 = por %p134, %p135
      %p137 = scmp.ne.s32.totalorder %s129, %s132
      %p138 = scmp.eq.s32.totalorder %s15, 0
      %p139 = por %p137, %p138
      %p140 = scmp.ne.s32.totalorder %s129, %s132
      %p141 = scmp.eq.s32.totalorder %s20, 3
      %p142 = por %p140, %p141
      %p143 = scmp.ne.s32.totalorder %s132, %s133
      %p144 = scmp.eq.s32.totalorder %s20, 0
      %p145 = por %p143, %p144
      %p146 = scmp.ne.s32.totalorder %s132, %s133
      %p147 = scmp.eq.s32.totalorder %s21, 3
      %p148 = por %p146, %p147
      %p150 = scmp.ne.s32.totalorder %s133, %s149
      %p151 = scmp.eq.s32.totalorder %s21, 0
      %p152 = por %p150, %p151
      %s154 = sadd.s32 %s153, 1
      %p157 = scmp.eq.s32.totalorder %s15, 3
      %p158 = scmp.ne.s32.totalorder %s153, %s155
      %p159 = scmp.eq.s32.totalorder %s15, 0
      %p160 = por %p158, %p159
      %p161 = scmp.ne.s32.totalorder %s153, %s155
      %p162 = scmp.eq.s32.totalorder %s20, 3
      %p163 = por %p161, %p162
      %p164 = scmp.ne.s32.totalorder %s155, %s156
      %p165 = scmp.eq.s32.totalorder %s20, 0
      %p166 = por %p164, %p165
      %p167 = scmp.ne.s32.totalorder %s155, %s156
      %p168 = scmp.eq.s32.totalorder %s21, 3
      %p169 = por %p167, %p168
      %p171 = scmp.ne.s32.totalorder %s156, %s170
      %p172 = scmp.eq.s32.totalorder %s21, 0
      %p173 = por %p171, %p172
      %s175 = sadd.s32 %s174, 1
      %p178 = scmp.eq.s32.totalorder %s15, 3
      %p179 = scmp.ne.s32.totalorder %s174, %s176
      %p180 = scmp.eq.s32.totalorder %s15, 0
      %p181 = por %p179, %p180
      %p182 = scmp.ne.s32.totalorder %s174, %s176
      %p183 = scmp.eq.s32.totalorder %s20, 3
      %p184 = por %p182, %p183
      %p185 = scmp.ne.s32.totalorder %s176, %s177
      %p186 = scmp.eq.s32.totalorder %s20, 0
      %p187 = por %p185, %p186
      %p188 = scmp.ne.s32.totalorder %s176, %s177
      %p189 = scmp.eq.s32.totalorder %s21, 3
      %p190 = por %p188, %p189
      %p192 = scmp.ne.s32.totalorder %s177, %s191
      %p193 = scmp.eq.s32.totalorder %s21, 0
      %p194 = por %p192, %p193
      %s196 = sadd.s32 %s195, 1
      %p199 = scmp.eq.s32.totalorder %s15, 3
      %p200 = scmp.ne.s32.totalorder %s195, %s197
      %p201 = scmp.eq.s32.totalorder %s15, 0
      %p202 = por %p200, %p201
      %p203 = scmp.ne.s32.totalorder %s195, %s197
      %p204 = scmp.eq.s32.totalorder %s20, 3
      %p205 = por %p203, %p204
      %p206 = scmp.ne.s32.totalorder %s197, %s198
      %p207 = scmp.eq.s32.totalorder %s20, 0
      %p208 = por %p206, %p207
      %p209 = scmp.ne.s32.totalorder %s197, %s198
      %p210 = scmp.eq.s32.totalorder %s21, 3
      %p211 = por %p209, %p210
      %p213 = scmp.ne.s32.totalorder %s198, %s212
      %p214 = scmp.eq.s32.totalorder %s21, 0
      %p215 = por %p213, %p214
      %s216 = ssub.s32 %s22, %s34
      %p217 = scmp.eq.s32.totalorder %s216, 0
      %s219 = sadd.s32 %s218, 1
      %s220 = scalar_select %p217, %s218, %s219
      %p223 = pneg %p217
      %p224 = scmp.eq.s32.totalorder %s15, 3
      %p225 = por %p223, %p224
      %p226 = scmp.ne.s32.totalorder %s218, %s221
      %p227 = scmp.eq.s32.totalorder %s15, 0
      %p228 = por %p226, %p227
      %p229 = scmp.ne.s32.totalorder %s218, %s221
      %p230 = scmp.eq.s32.totalorder %s20, 3
      %p231 = por %p229, %p230
      %p232 = scmp.ne.s32.totalorder %s221, %s222
      %p233 = scmp.eq.s32.totalorder %s20, 0
      %p234 = por %p232, %p233
      %p235 = scmp.ne.s32.totalorder %s221, %s222
      %p236 = scmp.eq.s32.totalorder %s21, 3
      %p237 = por %p235, %p236
      %p239 = scmp.ne.s32.totalorder %s222, %s238
      %p240 = scmp.eq.s32.totalorder %s21, 0
      %p241 = por %p239, %p240
      %p242 = scmp.le.s32.totalorder 1, %s15
      %p243 = scmp.lt.s32.totalorder %s15, 5
      %p244 = pnand %p242, %p243
      %p245 = pneg %p244
      // Predicated region
      $region9: #{tpu_custom_call.1} parent=5 // pred_check
        _
      $region10: #{tpu_custom_call.1} parent=5 // pred_check_branch
        %247 = sbr.rel (%p244) target = $region12
      $region11: #{tpu_custom_call.1} parent=5 // pred_region
        %s248 = ssub.s32 %s15, 1
        // Predicated region
        $region13: #{tpu_custom_call.1} parent=11 // pred_check
          %p249 = pneg %p53
        $region14: #{tpu_custom_call.1} parent=11 // pred_check_branch
          %251 = sbr.rel (%p249) target = $region16
        $region15: #{tpu_custom_call.1} parent=11 // pred_region
          %s252 = smul.u32 16, %s24
          %s253 = ssub.s32 2, %s252
          %s254 = smul.u32 128, %s253
          %p255 = scmp.lt.s32.totalorder %s252, 1
          %s256 = scalar_select %p255, %s252, 1
          %s257 = smul.addr %s256, 8
          %s258 = scalar_lea.vmem %s0, %s257
          %s259 = smul.u32 16, %s24
          %s260 = ssub.s32 2, %s259
          %s261 = smul.u32 128, %s260
        $region16: #{tpu_custom_call.1} parent=11 // pred_fallthru
          _
        // Predicated region
        $region17: #{tpu_custom_call.1} parent=11 // pred_check
          %p262 = pneg %p166
        $region18: #{tpu_custom_call.1} parent=11 // pred_check_branch
          %264 = sbr.rel (%p262) target = $region20
        $region19: #{tpu_custom_call.1} parent=11 // pred_region
          _
        $region20: #{tpu_custom_call.1} parent=11 // pred_fallthru
          _
        // Predicated region
        $region21: #{tpu_custom_call.1} parent=11 // pred_check
          %p265 = pneg %p187
        $region22: #{tpu_custom_call.1} parent=11 // pred_check_branch
          %267 = sbr.rel (%p265) target = $region24
        $region23: #{tpu_custom_call.1} parent=11 // pred_region
          _
        $region24: #{tpu_custom_call.1} parent=11 // pred_fallthru
          _
        // Predicated region
        $region25: #{tpu_custom_call.1} parent=11 // pred_check
          %p268 = pneg %p208
        $region26: #{tpu_custom_call.1} parent=11 // pred_check_branch
          %270 = sbr.rel (%p268) target = $region28
        $region27: #{tpu_custom_call.1} parent=11 // pred_region
          %s272 = ssub.s32 16, 16
          %273 = vsyncadd [#allocation10], %s272
          %s275 = sshll.u32 %s6, 4
          %s276 = int_to_ptr.vmem [resolvable:$true] %s275
          %278 = dma.vmem_to_smem %s276, 16, [#allocation8], [#allocation10]
        $region28: #{tpu_custom_call.1} parent=11 // pred_fallthru
          _
      $region12: #{tpu_custom_call.1} parent=5 // pred_fallthru
        _
      %p279 = scmp.lt.s32.totalorder %s15, 4
      // Predicated region
      $region29: #{tpu_custom_call.1} parent=5 // pred_check
        %p280 = pneg %p279
      $region30: #{tpu_custom_call.1} parent=5 // pred_check_branch
        %282 = sbr.rel (%p280) target = $region32
      $region31: #{tpu_custom_call.1} parent=5 // pred_region
        // Predicated region
        $region33: #{tpu_custom_call.1} parent=31 // pred_check
          %p283 = pneg %p77
        $region34: #{tpu_custom_call.1} parent=31 // pred_check_branch
          %285 = sbr.rel (%p283) target = $region36
        $region35: #{tpu_custom_call.1} parent=31 // pred_region
          %p286 = scmp.lt.s32.totalorder %s23, 1
          %s287 = scalar_select %p286, %s23, 1
          %p288 = scmp.lt.s32.totalorder %s287, 1
          %s289 = scalar_select %p288, %s287, 1
          %s290 = smul.addr %s289, 8
          %s291 = scalar_lea.vmem %s1, %s290
          %p292 = scmp.lt.s32.totalorder %s23, 1
          %s293 = scalar_select %p292, %s23, 1
        $region36: #{tpu_custom_call.1} parent=31 // pred_fallthru
          _
        // Predicated region
        $region37: #{tpu_custom_call.1} parent=31 // pred_check
          %p294 = pneg %p107
        $region38: #{tpu_custom_call.1} parent=31 // pred_check_branch
          %296 = sbr.rel (%p294) target = $region40
        $region39: #{tpu_custom_call.1} parent=31 // pred_region
          %p297 = scmp.lt.s32.totalorder %s23, 1
          %s298 = scalar_select %p297, %s23, 1
          %p299 = scmp.lt.s32.totalorder %s298, 1
          %s300 = scalar_select %p299, %s298, 1
          %s301 = smul.addr %s300, 8
          %s302 = scalar_lea.vmem %s2, %s301
          %p303 = scmp.lt.s32.totalorder %s23, 1
          %s304 = scalar_select %p303, %s23, 1
        $region40: #{tpu_custom_call.1} parent=31 // pred_fallthru
          _
        // Predicated region
        $region41: #{tpu_custom_call.1} parent=31 // pred_check
          %p305 = pneg %p139
        $region42: #{tpu_custom_call.1} parent=31 // pred_check_branch
          %307 = sbr.rel (%p305) target = $region44
        $region43: #{tpu_custom_call.1} parent=31 // pred_region
          %s308 = ssub.s32 %s23, 2
          %p309 = scmp.gt.s32.totalorder %s308, 0
          %s310 = scalar_select %p309, %s308, 0
          %s311 = smul.u32 4, %s310
          %p312 = scmp.lt.s32.totalorder %s311, 7
          %s313 = scalar_select %p312, %s311, 7
          %s314 = smul.addr %s313, 8
          %s315 = scalar_lea.vmem %s3, %s314
          %s316 = ssub.s32 %s23, 2
          %p317 = scmp.gt.s32.totalorder %s316, 0
          %s318 = scalar_select %p317, %s316, 0
          %s319 = smul.u32 4, %s318
        $region44: #{tpu_custom_call.1} parent=31 // pred_fallthru
          _
      $region32: #{tpu_custom_call.1} parent=5 // pred_fallthru
        _
      %p320 = scmp.le.s32.totalorder 1, %s15
      %p321 = scmp.lt.s32.totalorder %s15, 5
      %p322 = pnand %p320, %p321
      %p323 = pneg %p322
      // Predicated region
      $region45: #{tpu_custom_call.1} parent=5 // pred_check
        _
      $region46: #{tpu_custom_call.1} parent=5 // pred_check_branch
        %325 = sbr.rel (%p322) target = $region48
      $region47: #{tpu_custom_call.1} parent=5 // pred_region
        %s326 = ssub.s32 %s15, 1
        // Predicated region
        $region49: #{tpu_custom_call.1} parent=47 // pred_check
          %p327 = pneg %p208
        $region50: #{tpu_custom_call.1} parent=47 // pred_check_branch
          %329 = sbr.rel (%p327) target = $region52
        $region51: #{tpu_custom_call.1} parent=47 // pred_region
          %330 = dma.done [#allocation10], 16
        $region52: #{tpu_custom_call.1} parent=47 // pred_fallthru
          _
        %331 = sfence
        %s332 = smul.u32 16, %s24
        %s333 = ssub.s32 2, %s332
        %s334 = smul.u32 128, %s333
        %p335 = scmp.lt.s32.totalorder %s332, 1
        %s336 = scalar_select %p335, %s332, 1
        %s337 = smul.addr %s336, 8
        %s338 = scalar_lea.vmem %s0, %s337
        %p339 = pneg %p53
        %p340 = pneg %p50
        %p341 = scmp.lt.s32.totalorder %s25, 1
        %s342 = scalar_select %p341, %s25, 1
        %p343 = scmp.lt.s32.totalorder %s342, 1
        %s344 = scalar_select %p343, %s342, 1
        %s345 = smul.addr %s344, 8
        %s346 = scalar_lea.vmem %s1, %s345
        %p347 = pneg %p83
        %p348 = pneg %p80
        %p349 = scmp.lt.s32.totalorder %s25, 1
        %s350 = scalar_select %p349, %s25, 1
        %p351 = scmp.lt.s32.totalorder %s350, 1
        %s352 = scalar_select %p351, %s350, 1
        %s353 = smul.addr %s352, 8
        %s354 = scalar_lea.vmem %s2, %s353
        %p355 = pneg %p113
        %p356 = pneg %p110
        %s357 = ssub.s32 %s25, 2
        %p358 = scmp.gt.s32.totalorder %s357, 0
        %s359 = scalar_select %p358, %s357, 0
        %s360 = smul.u32 4, %s359
        %p361 = scmp.lt.s32.totalorder %s360, 7
        %s362 = scalar_select %p361, %s360, 7
        %s363 = smul.addr %s362, 8
        %s364 = scalar_lea.vmem %s3, %s363
        %p365 = pneg %p145
        %p366 = pneg %p142
        %p367 = pneg %p166
        %p368 = pneg %p163
        %p369 = pneg %p187
        %p370 = pneg %p184
        %p371 = pneg %p208
        %p372 = pneg %p205
        %p373 = pneg %p234
        %p374 = pneg %p231
        %s375 = smul.u32 16, %s24
        %s376 = ssub.s32 2, %s375
        %s377 = smul.u32 128, %s376
        %p378 = scmp.lt.s32.totalorder %s375, 1
        %s379 = scalar_select %p378, %s375, 1
        %s380 = smul.addr %s379, 8
        %s381 = scalar_lea.vmem %s0, %s380
        %s382 = smul.u32 16, %s24
        %s383 = ssub.s32 2, %s382
        %s384 = smul.u32 128, %s383
        %p385 = scmp.lt.s32.totalorder %s25, 1
        %s386 = scalar_select %p385, %s25, 1
        %p387 = scmp.lt.s32.totalorder %s386, 1
        %s388 = scalar_select %p387, %s386, 1
        %s389 = smul.addr %s388, 8
        %s390 = scalar_lea.vmem %s1, %s389
        %p391 = scmp.lt.s32.totalorder %s25, 1
        %s392 = scalar_select %p391, %s25, 1
        %p393 = scmp.lt.s32.totalorder %s25, 1
        %s394 = scalar_select %p393, %s25, 1
        %p395 = scmp.lt.s32.totalorder %s394, 1
        %s396 = scalar_select %p395, %s394, 1
        %s397 = smul.addr %s396, 8
        %s398 = scalar_lea.vmem %s2, %s397
        %p399 = scmp.lt.s32.totalorder %s25, 1
        %s400 = scalar_select %p399, %s25, 1
        %s401 = ssub.s32 %s25, 2
        %p402 = scmp.gt.s32.totalorder %s401, 0
        %s403 = scalar_select %p402, %s401, 0
        %s404 = smul.u32 4, %s403
        %p405 = scmp.lt.s32.totalorder %s404, 7
        %s406 = scalar_select %p405, %s404, 7
        %s407 = smul.addr %s406, 8
        %s408 = scalar_lea.vmem %s3, %s407
        %s409 = ssub.s32 %s25, 2
        %p410 = scmp.gt.s32.totalorder %s409, 0
        %s411 = scalar_select %p410, %s409, 0
        %s412 = smul.u32 4, %s411
        %s413 = smul.u32 16, %s24
        %s414 = ssub.s32 2, %s413
        %s415 = smul.u32 128, %s414
        %p417 = scmp.eq.s32.totalorder %s25, 0
        // Predicated region
        $region53: #{tpu_custom_call.1} parent=47 // pred_check
          %p418 = pneg %p417
        $region54: #{tpu_custom_call.1} parent=47 // pred_check_branch
          %420 = sbr.rel (%p418) target = $region56
        $region55: #{tpu_custom_call.1} parent=47 // pred_region
          %v421 = vld [vmem:[%s381] sm:$0xff]
          %v422 = vld [vmem:[%s381 + $0x8] sm:$0xff]
          %v423 = vld [vmem:[%s381 + $0x10] sm:$0xff]
          %v424 = vld [vmem:[%s381 + $0x18] sm:$0xff]
          %v425 = vld [vmem:[%s381 + $0x20] sm:$0xff]
          %v426 = vld [vmem:[%s381 + $0x28] sm:$0xff]
          %v427 = vld [vmem:[%s381 + $0x30] sm:$0xff]
          %v428 = vld [vmem:[%s381 + $0x38] sm:$0xff]
          %v429 = vld [vmem:[%s381 + $0x40] sm:$0xff]
          %v430 = vld [vmem:[%s381 + $0x48] sm:$0xff]
          %v431 = vld [vmem:[%s381 + $0x50] sm:$0xff]
          %v432 = vld [vmem:[%s381 + $0x58] sm:$0xff]
          %v433 = vld [vmem:[%s381 + $0x60] sm:$0xff]
          %v434 = vld [vmem:[%s381 + $0x68] sm:$0xff]
          %v435 = vld [vmem:[%s381 + $0x70] sm:$0xff]
          %v436 = vld [vmem:[%s381 + $0x78] sm:$0xff]
          %v437 = vmul.f32 %v421, %v421
          %v438 = vmul.f32 %v422, %v422
          %v439 = vmul.f32 %v423, %v423
          %v440 = vmul.f32 %v424, %v424
          %v441 = vmul.f32 %v425, %v425
          %v442 = vmul.f32 %v426, %v426
          %v443 = vmul.f32 %v427, %v427
          %v444 = vmul.f32 %v428, %v428
          %v445 = vmul.f32 %v429, %v429
          %v446 = vmul.f32 %v430, %v430
          %v447 = vmul.f32 %v431, %v431
          %v448 = vmul.f32 %v432, %v432
          %v449 = vmul.f32 %v433, %v433
          %v450 = vmul.f32 %v434, %v434
          %v451 = vmul.f32 %v435, %v435
          %v452 = vmul.f32 %v436, %v436
          %vm453 = vcmask 261120
          %v454 = vsel %vm453, %v437, 0.0
          %455 = vadd.xlane.f32.xlu0 %v454
          %v456 = vpop.xlane.xlu0 %455
          %v457 = vsel %vm453, %v438, 0.0
          %458 = vadd.xlane.f32.xlu0 %v457
          %v459 = vpop.xlane.xlu0 %458
          %v460 = vsel %vm453, %v439, 0.0
          %461 = vadd.xlane.f32.xlu0 %v460
          %v462 = vpop.xlane.xlu0 %461
          %v463 = vsel %vm453, %v440, 0.0
          %464 = vadd.xlane.f32.xlu0 %v463
          %v465 = vpop.xlane.xlu0 %464
          %v466 = vsel %vm453, %v441, 0.0
          %467 = vadd.xlane.f32.xlu0 %v466
          %v468 = vpop.xlane.xlu0 %467
          %v469 = vsel %vm453, %v442, 0.0
          %470 = vadd.xlane.f32.xlu0 %v469
          %v471 = vpop.xlane.xlu0 %470
          %v472 = vsel %vm453, %v443, 0.0
          %473 = vadd.xlane.f32.xlu0 %v472
          %v474 = vpop.xlane.xlu0 %473
          %v475 = vsel %vm453, %v444, 0.0
          %476 = vadd.xlane.f32.xlu0 %v475
          %v477 = vpop.xlane.xlu0 %476
          %v478 = vsel %vm453, %v445, 0.0
          %479 = vadd.xlane.f32.xlu0 %v478
          %v480 = vpop.xlane.xlu0 %479
          %v481 = vsel %vm453, %v446, 0.0
          %482 = vadd.xlane.f32.xlu0 %v481
          %v483 = vpop.xlane.xlu0 %482
          %v484 = vsel %vm453, %v447, 0.0
          %485 = vadd.xlane.f32.xlu0 %v484
          %v486 = vpop.xlane.xlu0 %485
          %v487 = vsel %vm453, %v448, 0.0
          %488 = vadd.xlane.f32.xlu0 %v487
          %v489 = vpop.xlane.xlu0 %488
          %v490 = vsel %vm453, %v449, 0.0
          %491 = vadd.xlane.f32.xlu0 %v490
          %v492 = vpop.xlane.xlu0 %491
          %v493 = vsel %vm453, %v450, 0.0
          %494 = vadd.xlane.f32.xlu0 %v493
          %v495 = vpop.xlane.xlu0 %494
          %v496 = vsel %vm453, %v451, 0.0
          %497 = vadd.xlane.f32.xlu0 %v496
          %v498 = vpop.xlane.xlu0 %497
          %v499 = vsel %vm453, %v452, 0.0
          %500 = vadd.xlane.f32.xlu0 %v499
          %v501 = vpop.xlane.xlu0 %500
          %v502 = vrcp.pop 32.0
          %v503 = vmul.f32 %v456, %v502
          %v504 = vmul.f32 %v459, %v502
          %v505 = vmul.f32 %v462, %v502
          %v506 = vmul.f32 %v465, %v502
          %v507 = vmul.f32 %v468, %v502
          %v508 = vmul.f32 %v471, %v502
          %v509 = vmul.f32 %v474, %v502
          %v510 = vmul.f32 %v477, %v502
          %v511 = vmul.f32 %v480, %v502
          %v512 = vmul.f32 %v483, %v502
          %v513 = vmul.f32 %v486, %v502
          %v514 = vmul.f32 %v489, %v502
          %v515 = vmul.f32 %v492, %v502
          %v516 = vmul.f32 %v495, %v502
          %v517 = vmul.f32 %v498, %v502
          %v518 = vmul.f32 %v501, %v502
          %v519 = vadd.f32 %v503, 1e-08
          %v520 = vadd.f32 %v504, 1e-08
          %v521 = vadd.f32 %v505, 1e-08
          %v522 = vadd.f32 %v506, 1e-08
          %v523 = vadd.f32 %v507, 1e-08
          %v524 = vadd.f32 %v508, 1e-08
          %v525 = vadd.f32 %v509, 1e-08
          %v526 = vadd.f32 %v510, 1e-08
          %v527 = vadd.f32 %v511, 1e-08
          %v528 = vadd.f32 %v512, 1e-08
          %v529 = vadd.f32 %v513, 1e-08
          %v530 = vadd.f32 %v514, 1e-08
          %v531 = vadd.f32 %v515, 1e-08
          %v532 = vadd.f32 %v516, 1e-08
          %v533 = vadd.f32 %v517, 1e-08
          %v534 = vadd.f32 %v518, 1e-08
          %v535 = vrsqrt.pop %v519
          %v536 = vrsqrt.pop %v520
          %v537 = vrsqrt.pop %v521
          %v538 = vrsqrt.pop %v522
          %v539 = vrsqrt.pop %v523
          %v540 = vrsqrt.pop %v524
          %v541 = vrsqrt.pop %v525
          %v542 = vrsqrt.pop %v526
          %v543 = vrsqrt.pop %v527
          %v544 = vrsqrt.pop %v528
          %v545 = vrsqrt.pop %v529
          %v546 = vrsqrt.pop %v530
          %v547 = vrsqrt.pop %v531
          %v548 = vrsqrt.pop %v532
          %v549 = vrsqrt.pop %v533
          %v550 = vrsqrt.pop %v534
          %v551 = vmul.f32 %v421, %v535
          %v552 = vmul.f32 %v422, %v536
          %v553 = vmul.f32 %v423, %v537
          %v554 = vmul.f32 %v424, %v538
          %v555 = vmul.f32 %v425, %v539
          %v556 = vmul.f32 %v426, %v540
          %v557 = vmul.f32 %v427, %v541
          %v558 = vmul.f32 %v428, %v542
          %v559 = vmul.f32 %v429, %v543
          %v560 = vmul.f32 %v430, %v544
          %v561 = vmul.f32 %v431, %v545
          %v562 = vmul.f32 %v432, %v546
          %v563 = vmul.f32 %v433, %v547
          %v564 = vmul.f32 %v434, %v548
          %v565 = vmul.f32 %v435, %v549
          %v566 = vmul.f32 %v436, %v550
          %v567 = vld [vmem:[%s4] sm:$0x1]
          %v569 = vlaneseq
          %v570 = vshrl.u32 %v569, 7
          %v571 = vsub.s32 0, %v570
          %v572 = vrot.slane %v567, %v571
          %v574 = vmul.f32 %v551, %v572
          %v575 = vmul.f32 %v552, %v572
          %v576 = vmul.f32 %v553, %v572
          %v577 = vmul.f32 %v554, %v572
          %v578 = vmul.f32 %v555, %v572
          %v579 = vmul.f32 %v556, %v572
          %v580 = vmul.f32 %v557, %v572
          %v581 = vmul.f32 %v558, %v572
          %v582 = vmul.f32 %v559, %v572
          %v583 = vmul.f32 %v560, %v572
          %v584 = vmul.f32 %v561, %v572
          %v585 = vmul.f32 %v562, %v572
          %v586 = vmul.f32 %v563, %v572
          %v587 = vmul.f32 %v564, %v572
          %v588 = vmul.f32 %v565, %v572
          %v589 = vmul.f32 %v566, %v572
          %v590 = vand.u32 2147483647, %v574
          %v591 = vand.u32 2147483647, %v575
          %v592 = vand.u32 2147483647, %v576
          %v593 = vand.u32 2147483647, %v577
          %v594 = vand.u32 2147483647, %v578
          %v595 = vand.u32 2147483647, %v579
          %v596 = vand.u32 2147483647, %v580
          %v597 = vand.u32 2147483647, %v581
          %v598 = vand.u32 2147483647, %v582
          %v599 = vand.u32 2147483647, %v583
          %v600 = vand.u32 2147483647, %v584
          %v601 = vand.u32 2147483647, %v585
          %v602 = vand.u32 2147483647, %v586
          %v603 = vand.u32 2147483647, %v587
          %v604 = vand.u32 2147483647, %v588
          %v605 = vand.u32 2147483647, %v589
          %v606 = vsel %vm453, %v590, -inf
          %607 = vmax.xlane.f32.xlu0 %v606
          %v608 = vpop.xlane.xlu0 %607
          %v609 = vsel %vm453, %v591, -inf
          %610 = vmax.xlane.f32.xlu0 %v609
          %v611 = vpop.xlane.xlu0 %610
          %v612 = vsel %vm453, %v592, -inf
          %613 = vmax.xlane.f32.xlu0 %v612
          %v614 = vpop.xlane.xlu0 %613
          %v615 = vsel %vm453, %v593, -inf
          %616 = vmax.xlane.f32.xlu0 %v615
          %v617 = vpop.xlane.xlu0 %616
          %v618 = vsel %vm453, %v594, -inf
          %619 = vmax.xlane.f32.xlu0 %v618
          %v620 = vpop.xlane.xlu0 %619
          %v621 = vsel %vm453, %v595, -inf
          %622 = vmax.xlane.f32.xlu0 %v621
          %v623 = vpop.xlane.xlu0 %622
          %v624 = vsel %vm453, %v596, -inf
          %625 = vmax.xlane.f32.xlu0 %v624
          %v626 = vpop.xlane.xlu0 %625
          %v627 = vsel %vm453, %v597, -inf
          %628 = vmax.xlane.f32.xlu0 %v627
          %v629 = vpop.xlane.xlu0 %628
          %v630 = vsel %vm453, %v598, -inf
          %631 = vmax.xlane.f32.xlu0 %v630
          %v632 = vpop.xlane.xlu0 %631
          %v633 = vsel %vm453, %v599, -inf
          %634 = vmax.xlane.f32.xlu0 %v633
          %v635 = vpop.xlane.xlu0 %634
          %v636 = vsel %vm453, %v600, -inf
          %637 = vmax.xlane.f32.xlu0 %v636
          %v638 = vpop.xlane.xlu0 %637
          %v639 = vsel %vm453, %v601, -inf
          %640 = vmax.xlane.f32.xlu0 %v639
          %v641 = vpop.xlane.xlu0 %640
          %v642 = vsel %vm453, %v602, -inf
          %643 = vmax.xlane.f32.xlu0 %v642
          %v644 = vpop.xlane.xlu0 %643
          %v645 = vsel %vm453, %v603, -inf
          %646 = vmax.xlane.f32.xlu0 %v645
          %v647 = vpop.xlane.xlu0 %646
          %v648 = vsel %vm453, %v604, -inf
          %649 = vmax.xlane.f32.xlu0 %v648
          %v650 = vpop.xlane.xlu0 %649
          %v651 = vsel %vm453, %v605, -inf
          %652 = vmax.xlane.f32.xlu0 %v651
          %v653 = vpop.xlane.xlu0 %652
          %v654 = vmax.f32 %v608, 1e-05
          %v655 = vmax.f32 %v611, 1e-05
          %v656 = vmax.f32 %v614, 1e-05
          %v657 = vmax.f32 %v617, 1e-05
          %v658 = vmax.f32 %v620, 1e-05
          %v659 = vmax.f32 %v623, 1e-05
          %v660 = vmax.f32 %v626, 1e-05
          %v661 = vmax.f32 %v629, 1e-05
          %v662 = vmax.f32 %v632, 1e-05
          %v663 = vmax.f32 %v635, 1e-05
          %v664 = vmax.f32 %v638, 1e-05
          %v665 = vmax.f32 %v641, 1e-05
          %v666 = vmax.f32 %v644, 1e-05
          %v667 = vmax.f32 %v647, 1e-05
          %v668 = vmax.f32 %v650, 1e-05
          %v669 = vmax.f32 %v653, 1e-05
          %v670 = vrcp.pop %v654
          %v671 = vmul.f32 127.0, %v670
          %v672 = vrcp.pop %v655
          %v673 = vmul.f32 127.0, %v672
          %v674 = vrcp.pop %v656
          %v675 = vmul.f32 127.0, %v674
          %v676 = vrcp.pop %v657
          %v677 = vmul.f32 127.0, %v676
          %v678 = vrcp.pop %v658
          %v679 = vmul.f32 127.0, %v678
          %v680 = vrcp.pop %v659
          %v681 = vmul.f32 127.0, %v680
          %v682 = vrcp.pop %v660
          %v683 = vmul.f32 127.0, %v682
          %v684 = vrcp.pop %v661
          %v685 = vmul.f32 127.0, %v684
          %v686 = vrcp.pop %v662
          %v687 = vmul.f32 127.0, %v686
          %v688 = vrcp.pop %v663
          %v689 = vmul.f32 127.0, %v688
          %v690 = vrcp.pop %v664
          %v691 = vmul.f32 127.0, %v690
          %v692 = vrcp.pop %v665
          %v693 = vmul.f32 127.0, %v692
          %v694 = vrcp.pop %v666
          %v695 = vmul.f32 127.0, %v694
          %v696 = vrcp.pop %v667
          %v697 = vmul.f32 127.0, %v696
          %v698 = vrcp.pop %v668
          %v699 = vmul.f32 127.0, %v698
          %v700 = vrcp.pop %v669
          %v701 = vmul.f32 127.0, %v700
          %v702 = vmul.f32 %v574, %v671
          %v703 = vmul.f32 %v575, %v673
          %v704 = vmul.f32 %v576, %v675
          %v705 = vmul.f32 %v577, %v677
          %v706 = vmul.f32 %v578, %v679
          %v707 = vmul.f32 %v579, %v681
          %v708 = vmul.f32 %v580, %v683
          %v709 = vmul.f32 %v581, %v685
          %v710 = vmul.f32 %v582, %v687
          %v711 = vmul.f32 %v583, %v689
          %v712 = vmul.f32 %v584, %v691
          %v713 = vmul.f32 %v585, %v693
          %v714 = vmul.f32 %v586, %v695
          %v715 = vmul.f32 %v587, %v697
          %v716 = vmul.f32 %v588, %v699
          %v717 = vmul.f32 %v589, %v701
          %v718 = vround.ne.pseudo %v702
          %v719 = vround.ne.pseudo %v703
          %v720 = vround.ne.pseudo %v704
          %v721 = vround.ne.pseudo %v705
          %v722 = vround.ne.pseudo %v706
          %v723 = vround.ne.pseudo %v707
          %v724 = vround.ne.pseudo %v708
          %v725 = vround.ne.pseudo %v709
          %v726 = vround.ne.pseudo %v710
          %v727 = vround.ne.pseudo %v711
          %v728 = vround.ne.pseudo %v712
          %v729 = vround.ne.pseudo %v713
          %v730 = vround.ne.pseudo %v714
          %v731 = vround.ne.pseudo %v715
          %v732 = vround.ne.pseudo %v716
          %v733 = vround.ne.pseudo %v717
          %v734 = vmax.f32 %v718, -128.0
          %v735 = vmax.f32 %v719, -128.0
          %v736 = vmax.f32 %v720, -128.0
          %v737 = vmax.f32 %v721, -128.0
          %v738 = vmax.f32 %v722, -128.0
          %v739 = vmax.f32 %v723, -128.0
          %v740 = vmax.f32 %v724, -128.0
          %v741 = vmax.f32 %v725, -128.0
          %v742 = vmax.f32 %v726, -128.0
          %v743 = vmax.f32 %v727, -128.0
          %v744 = vmax.f32 %v728, -128.0
          %v745 = vmax.f32 %v729, -128.0
          %v746 = vmax.f32 %v730, -128.0
          %v747 = vmax.f32 %v731, -128.0
          %v748 = vmax.f32 %v732, -128.0
          %v749 = vmax.f32 %v733, -128.0
          %v750 = vmin.f32 %v734, 127.0
          %v751 = vmin.f32 %v735, 127.0
          %v752 = vmin.f32 %v736, 127.0
          %v753 = vmin.f32 %v737, 127.0
          %v754 = vmin.f32 %v738, 127.0
          %v755 = vmin.f32 %v739, 127.0
          %v756 = vmin.f32 %v740, 127.0
          %v757 = vmin.f32 %v741, 127.0
          %v758 = vmin.f32 %v742, 127.0
          %v759 = vmin.f32 %v743, 127.0
          %v760 = vmin.f32 %v744, 127.0
          %v761 = vmin.f32 %v745, 127.0
          %v762 = vmin.f32 %v746, 127.0
          %v763 = vmin.f32 %v747, 127.0
          %v764 = vmin.f32 %v748, 127.0
          %v765 = vmin.f32 %v749, 127.0
          %v766 = vpack.c.bf16 %v751, %v750
          %v767 = vpack.c.bf16 %v753, %v752
          %v768 = vpack.c.bf16 %v755, %v754
          %v769 = vpack.c.bf16 %v757, %v756
          %v770 = vpack.c.bf16 %v759, %v758
          %v771 = vpack.c.bf16 %v761, %v760
          %v772 = vpack.c.bf16 %v763, %v762
          %v773 = vpack.c.bf16 %v765, %v764
          %774 = vst.msk [vmem:[#allocation2] sm:$0xff] %vm453, %v766
          %775 = vst.msk [vmem:[#allocation2 + $0x8] sm:$0xff] %vm453, %v767
          %776 = vst.msk [vmem:[#allocation2 + $0x10] sm:$0xff] %vm453, %v768
          %777 = vst.msk [vmem:[#allocation2 + $0x18] sm:$0xff] %vm453, %v769
          %778 = vst.msk [vmem:[#allocation2 + $0x20] sm:$0xff] %vm453, %v770
          %779 = vst.msk [vmem:[#allocation2 + $0x28] sm:$0xff] %vm453, %v771
          %780 = vst.msk [vmem:[#allocation2 + $0x30] sm:$0xff] %vm453, %v772
          %781 = vst.msk [vmem:[#allocation2 + $0x38] sm:$0xff] %vm453, %v773
          %vm782 = vcmask 7168
          %783 = vst.msk [vmem:[#allocation3] sm:$0xff] %vm782, %v654
          %784 = vst.msk [vmem:[#allocation3 + $0x8] sm:$0xff] %vm782, %v655
          %785 = vst.msk [vmem:[#allocation3 + $0x10] sm:$0xff] %vm782, %v656
          %786 = vst.msk [vmem:[#allocation3 + $0x18] sm:$0xff] %vm782, %v657
          %787 = vst.msk [vmem:[#allocation3 + $0x20] sm:$0xff] %vm782, %v658
          %788 = vst.msk [vmem:[#allocation3 + $0x28] sm:$0xff] %vm782, %v659
          %789 = vst.msk [vmem:[#allocation3 + $0x30] sm:$0xff] %vm782, %v660
          %790 = vst.msk [vmem:[#allocation3 + $0x38] sm:$0xff] %vm782, %v661
          %791 = vst.msk [vmem:[#allocation3 + $0x40] sm:$0xff] %vm782, %v662
          %792 = vst.msk [vmem:[#allocation3 + $0x48] sm:$0xff] %vm782, %v663
          %793 = vst.msk [vmem:[#allocation3 + $0x50] sm:$0xff] %vm782, %v664
          %794 = vst.msk [vmem:[#allocation3 + $0x58] sm:$0xff] %vm782, %v665
          %795 = vst.msk [vmem:[#allocation3 + $0x60] sm:$0xff] %vm782, %v666
          %796 = vst.msk [vmem:[#allocation3 + $0x68] sm:$0xff] %vm782, %v667
          %797 = vst.msk [vmem:[#allocation3 + $0x70] sm:$0xff] %vm782, %v668
          %798 = vst.msk [vmem:[#allocation3 + $0x78] sm:$0xff] %vm782, %v669
          %799 = vst.msk [vmem:[#allocation7] sm:$0xff] %vm453, 0.0
          %800 = vst.msk [vmem:[#allocation7 + $0x8] sm:$0xff] %vm453, 0.0
          %801 = vst.msk [vmem:[#allocation7 + $0x10] sm:$0xff] %vm453, 0.0
          %802 = vst.msk [vmem:[#allocation7 + $0x18] sm:$0xff] %vm453, 0.0
          %803 = vst.msk [vmem:[#allocation7 + $0x20] sm:$0xff] %vm453, 0.0
          %804 = vst.msk [vmem:[#allocation7 + $0x28] sm:$0xff] %vm453, 0.0
          %805 = vst.msk [vmem:[#allocation7 + $0x30] sm:$0xff] %vm453, 0.0
          %806 = vst.msk [vmem:[#allocation7 + $0x38] sm:$0xff] %vm453, 0.0
          %807 = vst.msk [vmem:[#allocation7 + $0x40] sm:$0xff] %vm453, 0.0
          %808 = vst.msk [vmem:[#allocation7 + $0x48] sm:$0xff] %vm453, 0.0
          %809 = vst.msk [vmem:[#allocation7 + $0x50] sm:$0xff] %vm453, 0.0
          %810 = vst.msk [vmem:[#allocation7 + $0x58] sm:$0xff] %vm453, 0.0
          %811 = vst.msk [vmem:[#allocation7 + $0x60] sm:$0xff] %vm453, 0.0
          %812 = vst.msk [vmem:[#allocation7 + $0x68] sm:$0xff] %vm453, 0.0
          %813 = vst.msk [vmem:[#allocation7 + $0x70] sm:$0xff] %vm453, 0.0
          %814 = vst.msk [vmem:[#allocation7 + $0x78] sm:$0xff] %vm453, 0.0
        $region56: #{tpu_custom_call.1} parent=47 // pred_fallthru
          _
        %p815 = scmp.lt.s32.totalorder %s25, 2
        // Predicated region
        $region57: #{tpu_custom_call.1} parent=47 // pred_check
          %p816 = pneg %p815
        $region58: #{tpu_custom_call.1} parent=47 // pred_check_branch
          %818 = sbr.rel (%p816) target = $region60
        $region59: #{tpu_custom_call.1} parent=47 // pred_region
          %v819 = vld [vmem:[#allocation2] sm:$0xff]
          %v820 = vld [vmem:[#allocation2 + $0x8] sm:$0xff]
          %v821 = vld [vmem:[#allocation2 + $0x10] sm:$0xff]
          %v822 = vld [vmem:[#allocation2 + $0x18] sm:$0xff]
          %v823 = vld [vmem:[#allocation2 + $0x20] sm:$0xff]
          %v824 = vld [vmem:[#allocation2 + $0x28] sm:$0xff]
          %v825 = vld [vmem:[#allocation2 + $0x30] sm:$0xff]
          %v826 = vld [vmem:[#allocation2 + $0x38] sm:$0xff]
          %v827 = vld [vmem:[#allocation3] sm:$0xff]
          %v828 = vld [vmem:[#allocation3 + $0x8] sm:$0xff]
          %v829 = vld [vmem:[#allocation3 + $0x10] sm:$0xff]
          %v830 = vld [vmem:[#allocation3 + $0x18] sm:$0xff]
          %v831 = vld [vmem:[#allocation3 + $0x20] sm:$0xff]
          %v832 = vld [vmem:[#allocation3 + $0x28] sm:$0xff]
          %v833 = vld [vmem:[#allocation3 + $0x30] sm:$0xff]
          %v834 = vld [vmem:[#allocation3 + $0x38] sm:$0xff]
          %v835 = vld [vmem:[#allocation3 + $0x40] sm:$0xff]
          %v836 = vld [vmem:[#allocation3 + $0x48] sm:$0xff]
          %v837 = vld [vmem:[#allocation3 + $0x50] sm:$0xff]
          %v838 = vld [vmem:[#allocation3 + $0x58] sm:$0xff]
          %v839 = vld [vmem:[#allocation3 + $0x60] sm:$0xff]
          %v840 = vld [vmem:[#allocation3 + $0x68] sm:$0xff]
          %v841 = vld [vmem:[#allocation3 + $0x70] sm:$0xff]
          %v842 = vld [vmem:[#allocation3 + $0x78] sm:$0xff]
          %s843 = sld [smem:[#allocation8]]
          %v844 = vstv %s843
          %v845 = vmul.f32 %v827, %v844
          %v846 = vmul.f32 %v828, %v844
          %v847 = vmul.f32 %v829, %v844
          %v848 = vmul.f32 %v830, %v844
          %v849 = vmul.f32 %v831, %v844
          %v850 = vmul.f32 %v832, %v844
          %v851 = vmul.f32 %v833, %v844
          %v852 = vmul.f32 %v834, %v844
          %v853 = vmul.f32 %v835, %v844
          %v854 = vmul.f32 %v836, %v844
          %v855 = vmul.f32 %v837, %v844
          %v856 = vmul.f32 %v838, %v844
          %v857 = vmul.f32 %v839, %v844
          %v858 = vmul.f32 %v840, %v844
          %v859 = vmul.f32 %v841, %v844
          %v860 = vmul.f32 %v842, %v844
          %v861 = vld [vmem:[%s390] sm:$0xff]
          %v862 = vunpack.c.l.s8.bf16 %v861
          %v863 = vunpack.c.h.s8.bf16 %v861
          %vm864 = vcmask 261120
          %v866 = vsel %vm864, %v819, 0
          %v869 = vsel %vm864, %v820, 0
          %v872 = vsel %vm864, %v821, 0
          %v875 = vsel %vm864, %v822, 0
          %v878 = vsel %vm864, %v823, 0
          %v881 = vsel %vm864, %v824, 0
          %v884 = vsel %vm864, %v825, 0
          %v887 = vsel %vm864, %v826, 0
          %889 = vmatprep.subr.bf16.mxu0 0
          %890 = vmatpush1.bf16.msra.mxu0 %v862
          %891 = vmatprep.subr.bf16.mxu0 0
          %892 = vmatpush1.bf16.msra.mxu0 %v863
          %893 = vmatprep.subr.bf16.mxu0 0
          %894 = vmatpush1.bf16.msra.mxu0 0
          %895 = vmatprep.subr.bf16.mxu0 0
          %896 = vmatpush1.bf16.msra.mxu0 0
          %897 = vmatprep.subr.bf16.mxu0 0
          %898 = vmatpush1.bf16.msra.mxu0 0
          %899 = vmatprep.subr.bf16.mxu0 0
          %900 = vmatpush1.bf16.msra.mxu0 0
          %901 = vmatprep.subr.bf16.mxu0 0
          %902 = vmatpush1.bf16.msra.mxu0 0
          %903 = vmatprep.subr.bf16.mxu0 0
          %904 = vmatpush1.bf16.msra.mxu0 0
          %905 = vmatprep.subr.bf16.mxu0 0
          %906 = vmatpush1.bf16.msra.mxu0 0
          %907 = vmatprep.subr.bf16.mxu0 0
          %908 = vmatpush1.bf16.msra.mxu0 0
          %909 = vmatprep.subr.bf16.mxu0 0
          %910 = vmatpush1.bf16.msra.mxu0 0
          %911 = vmatprep.subr.bf16.mxu0 0
          %912 = vmatpush1.bf16.msra.mxu0 0
          %913 = vmatprep.subr.bf16.mxu0 0
          %914 = vmatpush1.bf16.msra.mxu0 0
          %915 = vmatprep.subr.bf16.mxu0 0
          %916 = vmatpush1.bf16.msra.mxu0 0
          %917 = vmatprep.subr.bf16.mxu0 0
          %918 = vmatpush1.bf16.msra.mxu0 0
          %919 = vmatprep.subr.bf16.mxu0 0
          %920 = vmatpush1.bf16.msra.mxu0 0
          %921 = vmatprep.mubr.bf16.mxu0 0
          %922 = vmatmul.mubr.bf16.gmra.mrb[0].mxu0 %v866
          %v923 = vpop.f32.mrb[0].mxu0
          %v924 = vadd.f32 0.0, %v923
          %v925 = vpop.f32.mrb[0].mxu0
          %v926 = vpop.f32.mrb[0].mxu0
          %v927 = vadd.f32 0.0, %v926
          %v928 = vpop.f32.mrb[0].mxu0
          %929 = vmatprep.mubr.bf16.mxu0 0
          %930 = vmatmul.mubr.bf16.gmra.mrb[0].mxu0 %v869
          %v931 = vpop.f32.mrb[0].mxu0
          %v932 = vadd.f32 0.0, %v931
          %v933 = vpop.f32.mrb[0].mxu0
          %v934 = vpop.f32.mrb[0].mxu0
          %v935 = vadd.f32 0.0, %v934
          %v936 = vpop.f32.mrb[0].mxu0
          %937 = vmatprep.mubr.bf16.mxu0 0
          %938 = vmatmul.mubr.bf16.gmra.mrb[0].mxu0 %v872
          %v939 = vpop.f32.mrb[0].mxu0
          %v940 = vadd.f32 0.0, %v939
          %v941 = vpop.f32.mrb[0].mxu0
          %v942 = vpop.f32.mrb[0].mxu0
          %v943 = vadd.f32 0.0, %v942
          %v944 = vpop.f32.mrb[0].mxu0
          %945 = vmatprep.mubr.bf16.mxu0 0
          %946 = vmatmul.mubr.bf16.gmra.mrb[0].mxu0 %v875
          %v947 = vpop.f32.mrb[0].mxu0
          %v948 = vadd.f32 0.0, %v947
          %v949 = vpop.f32.mrb[0].mxu0
          %v950 = vpop.f32.mrb[0].mxu0
          %v951 = vadd.f32 0.0, %v950
          %v952 = vpop.f32.mrb[0].mxu0
          %953 = vmatprep.mubr.bf16.mxu0 0
          %954 = vmatmul.mubr.bf16.gmra.mrb[0].mxu0 %v878
          %v955 = vpop.f32.mrb[0].mxu0
          %v956 = vadd.f32 0.0, %v955
          %v957 = vpop.f32.mrb[0].mxu0
          %v958 = vpop.f32.mrb[0].mxu0
          %v959 = vadd.f32 0.0, %v958
          %v960 = vpop.f32.mrb[0].mxu0
          %961 = vmatprep.mubr.bf16.mxu0 0
          %962 = vmatmul.mubr.bf16.gmra.mrb[0].mxu0 %v881
          %v963 = vpop.f32.mrb[0].mxu0
          %v964 = vadd.f32 0.0, %v963
          %v965 = vpop.f32.mrb[0].mxu0
          %v966 = vpop.f32.mrb[0].mxu0
          %v967 = vadd.f32 0.0, %v966
          %v968 = vpop.f32.mrb[0].mxu0
          %969 = vmatprep.mubr.bf16.mxu0 0
          %970 = vmatmul.mubr.bf16.gmra.mrb[0].mxu0 %v884
          %v971 = vpop.f32.mrb[0].mxu0
          %v972 = vadd.f32 0.0, %v971
          %v973 = vpop.f32.mrb[0].mxu0
          %v974 = vpop.f32.mrb[0].mxu0
          %v975 = vadd.f32 0.0, %v974
          %v976 = vpop.f32.mrb[0].mxu0
          %977 = vmatprep.mubr.bf16.mxu0 0
          %978 = vmatmul.mubr.bf16.gmra.mrb[0].mxu0 %v887
          %v979 = vpop.f32.mrb[0].mxu0
          %v980 = vadd.f32 0.0, %v979
          %v981 = vpop.f32.mrb[0].mxu0
          %v982 = vpop.f32.mrb[0].mxu0
          %v983 = vadd.f32 0.0, %v982
          %v984 = vpop.f32.mrb[0].mxu0
          %985 = vdwg.mxu0
          %987 = vset.pattern.permute.xlu0 0
          %988 = vperm.xlu0 %987, %v845
          %v989 = vpop.permute.xlu0 %988
          %992 = vset.pattern.permute.xlu0 0
          %993 = vperm.xlu0 %992, %v846
          %v994 = vpop.permute.xlu0 %993
          %997 = vset.pattern.permute.xlu0 0
          %998 = vperm.xlu0 %997, %v847
          %v999 = vpop.permute.xlu0 %998
          %1002 = vset.pattern.permute.xlu0 0
          %1003 = vperm.xlu0 %1002, %v848
          %v1004 = vpop.permute.xlu0 %1003
          %1007 = vset.pattern.permute.xlu0 0
          %1008 = vperm.xlu0 %1007, %v849
          %v1009 = vpop.permute.xlu0 %1008
          %1012 = vset.pattern.permute.xlu0 0
          %1013 = vperm.xlu0 %1012, %v850
          %v1014 = vpop.permute.xlu0 %1013
          %1017 = vset.pattern.permute.xlu0 0
          %1018 = vperm.xlu0 %1017, %v851
          %v1019 = vpop.permute.xlu0 %1018
          %1022 = vset.pattern.permute.xlu0 0
          %1023 = vperm.xlu0 %1022, %v852
          %v1024 = vpop.permute.xlu0 %1023
          %1027 = vset.pattern.permute.xlu0 0
          %1028 = vperm.xlu0 %1027, %v853
          %v1029 = vpop.permute.xlu0 %1028
          %1032 = vset.pattern.permute.xlu0 0
          %1033 = vperm.xlu0 %1032, %v854
          %v1034 = vpop.permute.xlu0 %1033
          %1037 = vset.pattern.permute.xlu0 0
          %1038 = vperm.xlu0 %1037, %v855
          %v1039 = vpop.permute.xlu0 %1038
          %1042 = vset.pattern.permute.xlu0 0
          %1043 = vperm.xlu0 %1042, %v856
          %v1044 = vpop.permute.xlu0 %1043
          %1047 = vset.pattern.permute.xlu0 0
          %1048 = vperm.xlu0 %1047, %v857
          %v1049 = vpop.permute.xlu0 %1048
          %1052 = vset.pattern.permute.xlu0 0
          %1053 = vperm.xlu0 %1052, %v858
          %v1054 = vpop.permute.xlu0 %1053
          %1057 = vset.pattern.permute.xlu0 0
          %1058 = vperm.xlu0 %1057, %v859
          %v1059 = vpop.permute.xlu0 %1058
          %1062 = vset.pattern.permute.xlu0 0
          %1063 = vperm.xlu0 %1062, %v860
          %v1064 = vpop.permute.xlu0 %1063
          %v1066 = vmul.f32 %v924, %v989
          %v1067 = vmul.f32 %v927, %v994
          %v1068 = vmul.f32 %v932, %v999
          %v1069 = vmul.f32 %v935, %v1004
          %v1070 = vmul.f32 %v940, %v1009
          %v1071 = vmul.f32 %v943, %v1014
          %v1072 = vmul.f32 %v948, %v1019
          %v1073 = vmul.f32 %v951, %v1024
          %v1074 = vmul.f32 %v956, %v1029
          %v1075 = vmul.f32 %v959, %v1034
          %v1076 = vmul.f32 %v964, %v1039
          %v1077 = vmul.f32 %v967, %v1044
          %v1078 = vmul.f32 %v972, %v1049
          %v1079 = vmul.f32 %v975, %v1054
          %v1080 = vmul.f32 %v980, %v1059
          %v1081 = vmul.f32 %v983, %v1064
          %v1082 = vld [vmem:[%s398] sm:$0xff]
          %v1083 = vunpack.c.l.s8.bf16 %v1082
          %v1084 = vunpack.c.h.s8.bf16 %v1082
          %1085 = vmatprep.subr.bf16.mxu0 0
          %1086 = vmatpush1.bf16.msra.mxu0 %v1083
          %1087 = vmatprep.subr.bf16.mxu0 0
          %1088 = vmatpush1.bf16.msra.mxu0 %v1084
          %1089 = vmatprep.subr.bf16.mxu0 0
          %1090 = vmatpush1.bf16.msra.mxu0 0
          %1091 = vmatprep.subr.bf16.mxu0 0
          %1092 = vmatpush1.bf16.msra.mxu0 0
          %1093 = vmatprep.subr.bf16.mxu0 0
          %1094 = vmatpush1.bf16.msra.mxu0 0
          %1095 = vmatprep.subr.bf16.mxu0 0
          %1096 = vmatpush1.bf16.msra.mxu0 0
          %1097 = vmatprep.subr.bf16.mxu0 0
          %1098 = vmatpush1.bf16.msra.mxu0 0
          %1099 = vmatprep.subr.bf16.mxu0 0
          %1100 = vmatpush1.bf16.msra.mxu0 0
          %1101 = vmatprep.subr.bf16.mxu0 0
          %1102 = vmatpush1.bf16.msra.mxu0 0
          %1103 = vmatprep.subr.bf16.mxu0 0
          %1104 = vmatpush1.bf16.msra.mxu0 0
          %1105 = vmatprep.subr.bf16.mxu0 0
          %1106 = vmatpush1.bf16.msra.mxu0 0
          %1107 = vmatprep.subr.bf16.mxu0 0
          %1108 = vmatpush1.bf16.msra.mxu0 0
          %1109 = vmatprep.subr.bf16.mxu0 0
          %1110 = vmatpush1.bf16.msra.mxu0 0
          %1111 = vmatprep.subr.bf16.mxu0 0
          %1112 = vmatpush1.bf16.msra.mxu0 0
          %1113 = vmatprep.subr.bf16.mxu0 0
          %1114 = vmatpush1.bf16.msra.mxu0 0
          %1115 = vmatprep.subr.bf16.mxu0 0
          %1116 = vmatpush1.bf16.msra.mxu0 0
          %1117 = vmatprep.mubr.bf16.mxu0 0
          %1118 = vmatmul.mubr.bf16.gmra.mrb[0].mxu0 %v866
          %v1119 = vpop.f32.mrb[0].mxu0
          %v1120 = vadd.f32 0.0, %v1119
          %v1121 = vpop.f32.mrb[0].mxu0
          %v1122 = vpop.f32.mrb[0].mxu0
          %v1123 = vadd.f32 0.0, %v1122
          %v1124 = vpop.f32.mrb[0].mxu0
          %1125 = vmatprep.mubr.bf16.mxu0 0
          %1126 = vmatmul.mubr.bf16.gmra.mrb[0].mxu0 %v869
          %v1127 = vpop.f32.mrb[0].mxu0
          %v1128 = vadd.f32 0.0, %v1127
          %v1129 = vpop.f32.mrb[0].mxu0
          %v1130 = vpop.f32.mrb[0].mxu0
          %v1131 = vadd.f32 0.0, %v1130
          %v1132 = vpop.f32.mrb[0].mxu0
          %1133 = vmatprep.mubr.bf16.mxu0 0
          %1134 = vmatmul.mubr.bf16.gmra.mrb[0].mxu0 %v872
          %v1135 = vpop.f32.mrb[0].mxu0
          %v1136 = vadd.f32 0.0, %v1135
          %v1137 = vpop.f32.mrb[0].mxu0
          %v1138 = vpop.f32.mrb[0].mxu0
          %v1139 = vadd.f32 0.0, %v1138
          %v1140 = vpop.f32.mrb[0].mxu0
          %1141 = vmatprep.mubr.bf16.mxu0 0
          %1142 = vmatmul.mubr.bf16.gmra.mrb[0].mxu0 %v875
          %v1143 = vpop.f32.mrb[0].mxu0
          %v1144 = vadd.f32 0.0, %v1143
          %v1145 = vpop.f32.mrb[0].mxu0
          %v1146 = vpop.f32.mrb[0].mxu0
          %v1147 = vadd.f32 0.0, %v1146
          %v1148 = vpop.f32.mrb[0].mxu0
          %1149 = vmatprep.mubr.bf16.mxu0 0
          %1150 = vmatmul.mubr.bf16.gmra.mrb[0].mxu0 %v878
          %v1151 = vpop.f32.mrb[0].mxu0
          %v1152 = vadd.f32 0.0, %v1151
          %v1153 = vpop.f32.mrb[0].mxu0
          %v1154 = vpop.f32.mrb[0].mxu0
          %v1155 = vadd.f32 0.0, %v1154
          %v1156 = vpop.f32.mrb[0].mxu0
          %1157 = vmatprep.mubr.bf16.mxu0 0
          %1158 = vmatmul.mubr.bf16.gmra.mrb[0].mxu0 %v881
          %v1159 = vpop.f32.mrb[0].mxu0
          %v1160 = vadd.f32 0.0, %v1159
          %v1161 = vpop.f32.mrb[0].mxu0
          %v1162 = vpop.f32.mrb[0].mxu0
          %v1163 = vadd.f32 0.0, %v1162
          %v1164 = vpop.f32.mrb[0].mxu0
          %1165 = vmatprep.mubr.bf16.mxu0 0
          %1166 = vmatmul.mubr.bf16.gmra.mrb[0].mxu0 %v884
          %v1167 = vpop.f32.mrb[0].mxu0
          %v1168 = vadd.f32 0.0, %v1167
          %v1169 = vpop.f32.mrb[0].mxu0
          %v1170 = vpop.f32.mrb[0].mxu0
          %v1171 = vadd.f32 0.0, %v1170
          %v1172 = vpop.f32.mrb[0].mxu0
          %1173 = vmatprep.mubr.bf16.mxu0 0
          %1174 = vmatmul.mubr.bf16.gmra.mrb[0].mxu0 %v887
          %v1175 = vpop.f32.mrb[0].mxu0
          %v1176 = vadd.f32 0.0, %v1175
          %v1177 = vpop.f32.mrb[0].mxu0
          %v1178 = vpop.f32.mrb[0].mxu0
          %v1179 = vadd.f32 0.0, %v1178
          %v1180 = vpop.f32.mrb[0].mxu0
          %1181 = vdwg.mxu0
          %v1182 = vmul.f32 %v1120, %v989
          %v1183 = vmul.f32 %v1123, %v994
          %v1184 = vmul.f32 %v1128, %v999
          %v1185 = vmul.f32 %v1131, %v1004
          %v1186 = vmul.f32 %v1136, %v1009
          %v1187 = vmul.f32 %v1139, %v1014
          %v1188 = vmul.f32 %v1144, %v1019
          %v1189 = vmul.f32 %v1147, %v1024
          %v1190 = vmul.f32 %v1152, %v1029
          %v1191 = vmul.f32 %v1155, %v1034
          %v1192 = vmul.f32 %v1160, %v1039
          %v1193 = vmul.f32 %v1163, %v1044
          %v1194 = vmul.f32 %v1168, %v1049
          %v1195 = vmul.f32 %v1171, %v1054
          %v1196 = vmul.f32 %v1176, %v1059
          %v1197 = vmul.f32 %v1179, %v1064
          %v1198 = vxor.u32 %v1066, 2147483648
          %v1199 = vxor.u32 %v1067, 2147483648
          %v1200 = vxor.u32 %v1068, 2147483648
          %v1201 = vxor.u32 %v1069, 2147483648
          %v1202 = vxor.u32 %v1070, 2147483648
          %v1203 = vxor.u32 %v1071, 2147483648
          %v1204 = vxor.u32 %v1072, 2147483648
          %v1205 = vxor.u32 %v1073, 2147483648
          %v1206 = vxor.u32 %v1074, 2147483648
          %v1207 = vxor.u32 %v1075, 2147483648
          %v1208 = vxor.u32 %v1076, 2147483648
          %v1209 = vxor.u32 %v1077, 2147483648
          %v1210 = vxor.u32 %v1078, 2147483648
          %v1211 = vxor.u32 %v1079, 2147483648
          %v1212 = vxor.u32 %v1080, 2147483648
          %v1213 = vxor.u32 %v1081, 2147483648
          %v1214 = vmul.f32 %v1198, 1.442695
          %v1215 = vpow.pop %v1214
          %v1216 = vmul.f32 %v1199, 1.442695
          %v1217 = vpow.pop %v1216
          %v1218 = vmul.f32 %v1200, 1.442695
          %v1219 = vpow.pop %v1218
          %v1220 = vmul.f32 %v1201, 1.442695
          %v1221 = vpow.pop %v1220
          %v1222 = vmul.f32 %v1202, 1.442695
          %v1223 = vpow.pop %v1222
          %v1224 = vmul.f32 %v1203, 1.442695
          %v1225 = vpow.pop %v1224
          %v1226 = vmul.f32 %v1204, 1.442695
          %v1227 = vpow.pop %v1226
          %v1228 = vmul.f32 %v1205, 1.442695
          %v1229 = vpow.pop %v1228
          %v1230 = vmul.f32 %v1206, 1.442695
          %v1231 = vpow.pop %v1230
          %v1232 = vmul.f32 %v1207, 1.442695
          %v1233 = vpow.pop %v1232
          %v1234 = vmul.f32 %v1208, 1.442695
          %v1235 = vpow.pop %v1234
          %v1236 = vmul.f32 %v1209, 1.442695
          %v1237 = vpow.pop %v1236
          %v1238 = vmul.f32 %v1210, 1.442695
          %v1239 = vpow.pop %v1238
          %v1240 = vmul.f32 %v1211, 1.442695
          %v1241 = vpow.pop %v1240
          %v1242 = vmul.f32 %v1212, 1.442695
          %v1243 = vpow.pop %v1242
          %v1244 = vmul.f32 %v1213, 1.442695
          %v1245 = vpow.pop %v1244
          %v1246 = vadd.f32 %v1215, 1.0
          %v1247 = vadd.f32 %v1217, 1.0
          %v1248 = vadd.f32 %v1219, 1.0
          %v1249 = vadd.f32 %v1221, 1.0
          %v1250 = vadd.f32 %v1223, 1.0
          %v1251 = vadd.f32 %v1225, 1.0
          %v1252 = vadd.f32 %v1227, 1.0
          %v1253 = vadd.f32 %v1229, 1.0
          %v1254 = vadd.f32 %v1231, 1.0
          %v1255 = vadd.f32 %v1233, 1.0
          %v1256 = vadd.f32 %v1235, 1.0
          %v1257 = vadd.f32 %v1237, 1.0
          %v1258 = vadd.f32 %v1239, 1.0
          %v1259 = vadd.f32 %v1241, 1.0
          %v1260 = vadd.f32 %v1243, 1.0
          %v1261 = vadd.f32 %v1245, 1.0
          %v1262 = vrcp.pop %v1246
          %v1263 = vmul.f32 1.0, %v1262
          %v1264 = vrcp.pop %v1247
          %v1265 = vmul.f32 1.0, %v1264
          %v1266 = vrcp.pop %v1248
          %v1267 = vmul.f32 1.0, %v1266
          %v1268 = vrcp.pop %v1249
          %v1269 = vmul.f32 1.0, %v1268
          %v1270 = vrcp.pop %v1250
          %v1271 = vmul.f32 1.0, %v1270
          %v1272 = vrcp.pop %v1251
          %v1273 = vmul.f32 1.0, %v1272
          %v1274 = vrcp.pop %v1252
          %v1275 = vmul.f32 1.0, %v1274
          %v1276 = vrcp.pop %v1253
          %v1277 = vmul.f32 1.0, %v1276
          %v1278 = vrcp.pop %v1254
          %v1279 = vmul.f32 1.0, %v1278
          %v1280 = vrcp.pop %v1255
          %v1281 = vmul.f32 1.0, %v1280
          %v1282 = vrcp.pop %v1256
          %v1283 = vmul.f32 1.0, %v1282
          %v1284 = vrcp.pop %v1257
          %v1285 = vmul.f32 1.0, %v1284
          %v1286 = vrcp.pop %v1258
          %v1287 = vmul.f32 1.0, %v1286
          %v1288 = vrcp.pop %v1259
          %v1289 = vmul.f32 1.0, %v1288
          %v1290 = vrcp.pop %v1260
          %v1291 = vmul.f32 1.0, %v1290
          %v1292 = vrcp.pop %v1261
          %v1293 = vmul.f32 1.0, %v1292
          %v1294 = vmul.f32 %v1066, %v1263
          %v1295 = vmul.f32 %v1067, %v1265
          %v1296 = vmul.f32 %v1068, %v1267
          %v1297 = vmul.f32 %v1069, %v1269
          %v1298 = vmul.f32 %v1070, %v1271
          %v1299 = vmul.f32 %v1071, %v1273
          %v1300 = vmul.f32 %v1072, %v1275
          %v1301 = vmul.f32 %v1073, %v1277
          %v1302 = vmul.f32 %v1074, %v1279
          %v1303 = vmul.f32 %v1075, %v1281
          %v1304 = vmul.f32 %v1076, %v1283
          %v1305 = vmul.f32 %v1077, %v1285
          %v1306 = vmul.f32 %v1078, %v1287
          %v1307 = vmul.f32 %v1079, %v1289
          %v1308 = vmul.f32 %v1080, %v1291
          %v1309 = vmul.f32 %v1081, %v1293
          %v1310 = vmul.f32 %v1294, %v1182
          %v1311 = vmul.f32 %v1295, %v1183
          %v1312 = vmul.f32 %v1296, %v1184
          %v1313 = vmul.f32 %v1297, %v1185
          %v1314 = vmul.f32 %v1298, %v1186
          %v1315 = vmul.f32 %v1299, %v1187
          %v1316 = vmul.f32 %v1300, %v1188
          %v1317 = vmul.f32 %v1301, %v1189
          %v1318 = vmul.f32 %v1302, %v1190
          %v1319 = vmul.f32 %v1303, %v1191
          %v1320 = vmul.f32 %v1304, %v1192
          %v1321 = vmul.f32 %v1305, %v1193
          %v1322 = vmul.f32 %v1306, %v1194
          %v1323 = vmul.f32 %v1307, %v1195
          %v1324 = vmul.f32 %v1308, %v1196
          %v1325 = vmul.f32 %v1309, %v1197
          %s1326 = smul.u32 %s25, 128
          %s1327 = scalar_lea.vmem [#allocation4], %s1326
          %1328 = vst [vmem:[%s1327] sm:$0xff] %v1310
          %1329 = vst [vmem:[%s1327 + $0x8] sm:$0xff] %v1311
          %1330 = vst [vmem:[%s1327 + $0x10] sm:$0xff] %v1312
          %1331 = vst [vmem:[%s1327 + $0x18] sm:$0xff] %v1313
          %1332 = vst [vmem:[%s1327 + $0x20] sm:$0xff] %v1314
          %1333 = vst [vmem:[%s1327 + $0x28] sm:$0xff] %v1315
          %1334 = vst [vmem:[%s1327 + $0x30] sm:$0xff] %v1316
          %1335 = vst [vmem:[%s1327 + $0x38] sm:$0xff] %v1317
          %1336 = vst [vmem:[%s1327 + $0x40] sm:$0xff] %v1318
          %1337 = vst [vmem:[%s1327 + $0x48] sm:$0xff] %v1319
          %1338 = vst [vmem:[%s1327 + $0x50] sm:$0xff] %v1320
          %1339 = vst [vmem:[%s1327 + $0x58] sm:$0xff] %v1321
          %1340 = vst [vmem:[%s1327 + $0x60] sm:$0xff] %v1322
          %1341 = vst [vmem:[%s1327 + $0x68] sm:$0xff] %v1323
          %1342 = vst [vmem:[%s1327 + $0x70] sm:$0xff] %v1324
          %1343 = vst [vmem:[%s1327 + $0x78] sm:$0xff] %v1325
        $region60: #{tpu_custom_call.1} parent=47 // pred_fallthru
          _
        %p1344 = scmp.eq.s32.totalorder %s25, 1
        // Predicated region
        $region61: #{tpu_custom_call.1} parent=47 // pred_check
          %p1345 = pneg %p1344
        $region62: #{tpu_custom_call.1} parent=47 // pred_check_branch
          %1347 = sbr.rel (%p1345) target = $region64
        $region63: #{tpu_custom_call.1} parent=47 // pred_region
          %v1348 = vld [vmem:[#allocation4] sm:$0xff]
          %v1349 = vld [vmem:[#allocation4 + $0x8] sm:$0xff]
          %v1350 = vld [vmem:[#allocation4 + $0x10] sm:$0xff]
          %v1351 = vld [vmem:[#allocation4 + $0x18] sm:$0xff]
          %v1352 = vld [vmem:[#allocation4 + $0x20] sm:$0xff]
          %v1353 = vld [vmem:[#allocation4 + $0x28] sm:$0xff]
          %v1354 = vld [vmem:[#allocation4 + $0x30] sm:$0xff]
          %v1355 = vld [vmem:[#allocation4 + $0x38] sm:$0xff]
          %v1356 = vld [vmem:[#allocation4 + $0x40] sm:$0xff]
          %v1357 = vld [vmem:[#allocation4 + $0x48] sm:$0xff]
          %v1358 = vld [vmem:[#allocation4 + $0x50] sm:$0xff]
          %v1359 = vld [vmem:[#allocation4 + $0x58] sm:$0xff]
          %v1360 = vld [vmem:[#allocation4 + $0x60] sm:$0xff]
          %v1361 = vld [vmem:[#allocation4 + $0x68] sm:$0xff]
          %v1362 = vld [vmem:[#allocation4 + $0x70] sm:$0xff]
          %v1363 = vld [vmem:[#allocation4 + $0x78] sm:$0xff]
          %v1364 = vld [vmem:[#allocation4 + $0x80] sm:$0xff]
          %v1365 = vld [vmem:[#allocation4 + $0x88] sm:$0xff]
          %v1366 = vld [vmem:[#allocation4 + $0x90] sm:$0xff]
          %v1367 = vld [vmem:[#allocation4 + $0x98] sm:$0xff]
          %v1368 = vld [vmem:[#allocation4 + $0xa0] sm:$0xff]
          %v1369 = vld [vmem:[#allocation4 + $0xa8] sm:$0xff]
          %v1370 = vld [vmem:[#allocation4 + $0xb0] sm:$0xff]
          %v1371 = vld [vmem:[#allocation4 + $0xb8] sm:$0xff]
          %v1372 = vld [vmem:[#allocation4 + $0xc0] sm:$0xff]
          %v1373 = vld [vmem:[#allocation4 + $0xc8] sm:$0xff]
          %v1374 = vld [vmem:[#allocation4 + $0xd0] sm:$0xff]
          %v1375 = vld [vmem:[#allocation4 + $0xd8] sm:$0xff]
          %v1376 = vld [vmem:[#allocation4 + $0xe0] sm:$0xff]
          %v1377 = vld [vmem:[#allocation4 + $0xe8] sm:$0xff]
          %v1378 = vld [vmem:[#allocation4 + $0xf0] sm:$0xff]
          %v1379 = vld [vmem:[#allocation4 + $0xf8] sm:$0xff]
          %v1380 = vmul.f32 %v1348, %v1348
          %v1381 = vmul.f32 %v1349, %v1349
          %v1382 = vmul.f32 %v1350, %v1350
          %v1383 = vmul.f32 %v1351, %v1351
          %v1384 = vmul.f32 %v1352, %v1352
          %v1385 = vmul.f32 %v1353, %v1353
          %v1386 = vmul.f32 %v1354, %v1354
          %v1387 = vmul.f32 %v1355, %v1355
          %v1388 = vmul.f32 %v1356, %v1356
          %v1389 = vmul.f32 %v1357, %v1357
          %v1390 = vmul.f32 %v1358, %v1358
          %v1391 = vmul.f32 %v1359, %v1359
          %v1392 = vmul.f32 %v1360, %v1360
          %v1393 = vmul.f32 %v1361, %v1361
          %v1394 = vmul.f32 %v1362, %v1362
          %v1395 = vmul.f32 %v1363, %v1363
          %v1396 = vmul.f32 %v1364, %v1364
          %v1397 = vmul.f32 %v1365, %v1365
          %v1398 = vmul.f32 %v1366, %v1366
          %v1399 = vmul.f32 %v1367, %v1367
          %v1400 = vmul.f32 %v1368, %v1368
          %v1401 = vmul.f32 %v1369, %v1369
          %v1402 = vmul.f32 %v1370, %v1370
          %v1403 = vmul.f32 %v1371, %v1371
          %v1404 = vmul.f32 %v1372, %v1372
          %v1405 = vmul.f32 %v1373, %v1373
          %v1406 = vmul.f32 %v1374, %v1374
          %v1407 = vmul.f32 %v1375, %v1375
          %v1408 = vmul.f32 %v1376, %v1376
          %v1409 = vmul.f32 %v1377, %v1377
          %v1410 = vmul.f32 %v1378, %v1378
          %v1411 = vmul.f32 %v1379, %v1379
          %1412 = vadd.xlane.f32.xlu0 %v1380
          %v1413 = vpop.xlane.xlu0 %1412
          %1414 = vadd.xlane.f32.xlu0 %v1381
          %v1415 = vpop.xlane.xlu0 %1414
          %1416 = vadd.xlane.f32.xlu0 %v1382
          %v1417 = vpop.xlane.xlu0 %1416
          %1418 = vadd.xlane.f32.xlu0 %v1383
          %v1419 = vpop.xlane.xlu0 %1418
          %1420 = vadd.xlane.f32.xlu0 %v1384
          %v1421 = vpop.xlane.xlu0 %1420
          %1422 = vadd.xlane.f32.xlu0 %v1385
          %v1423 = vpop.xlane.xlu0 %1422
          %1424 = vadd.xlane.f32.xlu0 %v1386
          %v1425 = vpop.xlane.xlu0 %1424
          %1426 = vadd.xlane.f32.xlu0 %v1387
          %v1427 = vpop.xlane.xlu0 %1426
          %1428 = vadd.xlane.f32.xlu0 %v1388
          %v1429 = vpop.xlane.xlu0 %1428
          %1430 = vadd.xlane.f32.xlu0 %v1389
          %v1431 = vpop.xlane.xlu0 %1430
          %1432 = vadd.xlane.f32.xlu0 %v1390
          %v1433 = vpop.xlane.xlu0 %1432
          %1434 = vadd.xlane.f32.xlu0 %v1391
          %v1435 = vpop.xlane.xlu0 %1434
          %1436 = vadd.xlane.f32.xlu0 %v1392
          %v1437 = vpop.xlane.xlu0 %1436
          %1438 = vadd.xlane.f32.xlu0 %v1393
          %v1439 = vpop.xlane.xlu0 %1438
          %1440 = vadd.xlane.f32.xlu0 %v1394
          %v1441 = vpop.xlane.xlu0 %1440
          %1442 = vadd.xlane.f32.xlu0 %v1395
          %v1443 = vpop.xlane.xlu0 %1442
          %1444 = vadd.xlane.f32.xlu0 %v1396
          %v1445 = vpop.xlane.xlu0 %1444
          %1446 = vadd.xlane.f32.xlu0 %v1397
          %v1447 = vpop.xlane.xlu0 %1446
          %1448 = vadd.xlane.f32.xlu0 %v1398
          %v1449 = vpop.xlane.xlu0 %1448
          %1450 = vadd.xlane.f32.xlu0 %v1399
          %v1451 = vpop.xlane.xlu0 %1450
          %1452 = vadd.xlane.f32.xlu0 %v1400
          %v1453 = vpop.xlane.xlu0 %1452
          %1454 = vadd.xlane.f32.xlu0 %v1401
          %v1455 = vpop.xlane.xlu0 %1454
          %1456 = vadd.xlane.f32.xlu0 %v1402
          %v1457 = vpop.xlane.xlu0 %1456
          %1458 = vadd.xlane.f32.xlu0 %v1403
          %v1459 = vpop.xlane.xlu0 %1458
          %1460 = vadd.xlane.f32.xlu0 %v1404
          %v1461 = vpop.xlane.xlu0 %1460
          %1462 = vadd.xlane.f32.xlu0 %v1405
          %v1463 = vpop.xlane.xlu0 %1462
          %1464 = vadd.xlane.f32.xlu0 %v1406
          %v1465 = vpop.xlane.xlu0 %1464
          %1466 = vadd.xlane.f32.xlu0 %v1407
          %v1467 = vpop.xlane.xlu0 %1466
          %1468 = vadd.xlane.f32.xlu0 %v1408
          %v1469 = vpop.xlane.xlu0 %1468
          %1470 = vadd.xlane.f32.xlu0 %v1409
          %v1471 = vpop.xlane.xlu0 %1470
          %1472 = vadd.xlane.f32.xlu0 %v1410
          %v1473 = vpop.xlane.xlu0 %1472
          %1474 = vadd.xlane.f32.xlu0 %v1411
          %v1475 = vpop.xlane.xlu0 %1474
          %v1476 = vadd.f32 %v1413, %v1445
          %v1477 = vadd.f32 %v1415, %v1447
          %v1478 = vadd.f32 %v1417, %v1449
          %v1479 = vadd.f32 %v1419, %v1451
          %v1480 = vadd.f32 %v1421, %v1453
          %v1481 = vadd.f32 %v1423, %v1455
          %v1482 = vadd.f32 %v1425, %v1457
          %v1483 = vadd.f32 %v1427, %v1459
          %v1484 = vadd.f32 %v1429, %v1461
          %v1485 = vadd.f32 %v1431, %v1463
          %v1486 = vadd.f32 %v1433, %v1465
          %v1487 = vadd.f32 %v1435, %v1467
          %v1488 = vadd.f32 %v1437, %v1469
          %v1489 = vadd.f32 %v1439, %v1471
          %v1490 = vadd.f32 %v1441, %v1473
          %v1491 = vadd.f32 %v1443, %v1475
          %v1492 = vrcp.pop 256.0
          %v1493 = vmul.f32 %v1476, %v1492
          %v1494 = vmul.f32 %v1477, %v1492
          %v1495 = vmul.f32 %v1478, %v1492
          %v1496 = vmul.f32 %v1479, %v1492
          %v1497 = vmul.f32 %v1480, %v1492
          %v1498 = vmul.f32 %v1481, %v1492
          %v1499 = vmul.f32 %v1482, %v1492
          %v1500 = vmul.f32 %v1483, %v1492
          %v1501 = vmul.f32 %v1484, %v1492
          %v1502 = vmul.f32 %v1485, %v1492
          %v1503 = vmul.f32 %v1486, %v1492
          %v1504 = vmul.f32 %v1487, %v1492
          %v1505 = vmul.f32 %v1488, %v1492
          %v1506 = vmul.f32 %v1489, %v1492
          %v1507 = vmul.f32 %v1490, %v1492
          %v1508 = vmul.f32 %v1491, %v1492
          %v1509 = vadd.f32 %v1493, 1e-08
          %v1510 = vadd.f32 %v1494, 1e-08
          %v1511 = vadd.f32 %v1495, 1e-08
          %v1512 = vadd.f32 %v1496, 1e-08
          %v1513 = vadd.f32 %v1497, 1e-08
          %v1514 = vadd.f32 %v1498, 1e-08
          %v1515 = vadd.f32 %v1499, 1e-08
          %v1516 = vadd.f32 %v1500, 1e-08
          %v1517 = vadd.f32 %v1501, 1e-08
          %v1518 = vadd.f32 %v1502, 1e-08
          %v1519 = vadd.f32 %v1503, 1e-08
          %v1520 = vadd.f32 %v1504, 1e-08
          %v1521 = vadd.f32 %v1505, 1e-08
          %v1522 = vadd.f32 %v1506, 1e-08
          %v1523 = vadd.f32 %v1507, 1e-08
          %v1524 = vadd.f32 %v1508, 1e-08
          %v1525 = vrsqrt.pop %v1509
          %v1526 = vrsqrt.pop %v1510
          %v1527 = vrsqrt.pop %v1511
          %v1528 = vrsqrt.pop %v1512
          %v1529 = vrsqrt.pop %v1513
          %v1530 = vrsqrt.pop %v1514
          %v1531 = vrsqrt.pop %v1515
          %v1532 = vrsqrt.pop %v1516
          %v1533 = vrsqrt.pop %v1517
          %v1534 = vrsqrt.pop %v1518
          %v1535 = vrsqrt.pop %v1519
          %v1536 = vrsqrt.pop %v1520
          %v1537 = vrsqrt.pop %v1521
          %v1538 = vrsqrt.pop %v1522
          %v1539 = vrsqrt.pop %v1523
          %v1540 = vrsqrt.pop %v1524
          %v1541 = vmul.f32 %v1348, %v1525
          %v1542 = vmul.f32 %v1349, %v1526
          %v1543 = vmul.f32 %v1350, %v1527
          %v1544 = vmul.f32 %v1351, %v1528
          %v1545 = vmul.f32 %v1352, %v1529
          %v1546 = vmul.f32 %v1353, %v1530
          %v1547 = vmul.f32 %v1354, %v1531
          %v1548 = vmul.f32 %v1355, %v1532
          %v1549 = vmul.f32 %v1356, %v1533
          %v1550 = vmul.f32 %v1357, %v1534
          %v1551 = vmul.f32 %v1358, %v1535
          %v1552 = vmul.f32 %v1359, %v1536
          %v1553 = vmul.f32 %v1360, %v1537
          %v1554 = vmul.f32 %v1361, %v1538
          %v1555 = vmul.f32 %v1362, %v1539
          %v1556 = vmul.f32 %v1363, %v1540
          %v1557 = vmul.f32 %v1364, %v1525
          %v1558 = vmul.f32 %v1365, %v1526
          %v1559 = vmul.f32 %v1366, %v1527
          %v1560 = vmul.f32 %v1367, %v1528
          %v1561 = vmul.f32 %v1368, %v1529
          %v1562 = vmul.f32 %v1369, %v1530
          %v1563 = vmul.f32 %v1370, %v1531
          %v1564 = vmul.f32 %v1371, %v1532
          %v1565 = vmul.f32 %v1372, %v1533
          %v1566 = vmul.f32 %v1373, %v1534
          %v1567 = vmul.f32 %v1374, %v1535
          %v1568 = vmul.f32 %v1375, %v1536
          %v1569 = vmul.f32 %v1376, %v1537
          %v1570 = vmul.f32 %v1377, %v1538
          %v1571 = vmul.f32 %v1378, %v1539
          %v1572 = vmul.f32 %v1379, %v1540
          %v1573 = vld [vmem:[%s5] sm:$0x1]
          %v1574 = vld [vmem:[%s5 + $0x1] sm:$0x1]
          %v1577 = vlaneseq
          %v1578 = vshrl.u32 %v1577, 7
          %v1579 = vsub.s32 0, %v1578
          %v1580 = vrot.slane %v1573, %v1579
          %v1581 = vlaneseq
          %v1582 = vshrl.u32 %v1581, 7
          %v1583 = vsub.s32 0, %v1582
          %v1584 = vrot.slane %v1574, %v1583
          %v1587 = vmul.f32 %v1541, %v1580
          %v1588 = vmul.f32 %v1542, %v1580
          %v1589 = vmul.f32 %v1543, %v1580
          %v1590 = vmul.f32 %v1544, %v1580
          %v1591 = vmul.f32 %v1545, %v1580
          %v1592 = vmul.f32 %v1546, %v1580
          %v1593 = vmul.f32 %v1547, %v1580
          %v1594 = vmul.f32 %v1548, %v1580
          %v1595 = vmul.f32 %v1549, %v1580
          %v1596 = vmul.f32 %v1550, %v1580
          %v1597 = vmul.f32 %v1551, %v1580
          %v1598 = vmul.f32 %v1552, %v1580
          %v1599 = vmul.f32 %v1553, %v1580
          %v1600 = vmul.f32 %v1554, %v1580
          %v1601 = vmul.f32 %v1555, %v1580
          %v1602 = vmul.f32 %v1556, %v1580
          %v1603 = vmul.f32 %v1557, %v1584
          %v1604 = vmul.f32 %v1558, %v1584
          %v1605 = vmul.f32 %v1559, %v1584
          %v1606 = vmul.f32 %v1560, %v1584
          %v1607 = vmul.f32 %v1561, %v1584
          %v1608 = vmul.f32 %v1562, %v1584
          %v1609 = vmul.f32 %v1563, %v1584
          %v1610 = vmul.f32 %v1564, %v1584
          %v1611 = vmul.f32 %v1565, %v1584
          %v1612 = vmul.f32 %v1566, %v1584
          %v1613 = vmul.f32 %v1567, %v1584
          %v1614 = vmul.f32 %v1568, %v1584
          %v1615 = vmul.f32 %v1569, %v1584
          %v1616 = vmul.f32 %v1570, %v1584
          %v1617 = vmul.f32 %v1571, %v1584
          %v1618 = vmul.f32 %v1572, %v1584
          %v1619 = vand.u32 2147483647, %v1587
          %v1620 = vand.u32 2147483647, %v1588
          %v1621 = vand.u32 2147483647, %v1589
          %v1622 = vand.u32 2147483647, %v1590
          %v1623 = vand.u32 2147483647, %v1591
          %v1624 = vand.u32 2147483647, %v1592
          %v1625 = vand.u32 2147483647, %v1593
          %v1626 = vand.u32 2147483647, %v1594
          %v1627 = vand.u32 2147483647, %v1595
          %v1628 = vand.u32 2147483647, %v1596
          %v1629 = vand.u32 2147483647, %v1597
          %v1630 = vand.u32 2147483647, %v1598
          %v1631 = vand.u32 2147483647, %v1599
          %v1632 = vand.u32 2147483647, %v1600
          %v1633 = vand.u32 2147483647, %v1601
          %v1634 = vand.u32 2147483647, %v1602
          %v1635 = vand.u32 2147483647, %v1603
          %v1636 = vand.u32 2147483647, %v1604
          %v1637 = vand.u32 2147483647, %v1605
          %v1638 = vand.u32 2147483647, %v1606
          %v1639 = vand.u32 2147483647, %v1607
          %v1640 = vand.u32 2147483647, %v1608
          %v1641 = vand.u32 2147483647, %v1609
          %v1642 = vand.u32 2147483647, %v1610
          %v1643 = vand.u32 2147483647, %v1611
          %v1644 = vand.u32 2147483647, %v1612
          %v1645 = vand.u32 2147483647, %v1613
          %v1646 = vand.u32 2147483647, %v1614
          %v1647 = vand.u32 2147483647, %v1615
          %v1648 = vand.u32 2147483647, %v1616
          %v1649 = vand.u32 2147483647, %v1617
          %v1650 = vand.u32 2147483647, %v1618
          %1651 = vmax.xlane.f32.xlu0 %v1619
          %v1652 = vpop.xlane.xlu0 %1651
          %1653 = vmax.xlane.f32.xlu0 %v1620
          %v1654 = vpop.xlane.xlu0 %1653
          %1655 = vmax.xlane.f32.xlu0 %v1621
          %v1656 = vpop.xlane.xlu0 %1655
          %1657 = vmax.xlane.f32.xlu0 %v1622
          %v1658 = vpop.xlane.xlu0 %1657
          %1659 = vmax.xlane.f32.xlu0 %v1623
          %v1660 = vpop.xlane.xlu0 %1659
          %1661 = vmax.xlane.f32.xlu0 %v1624
          %v1662 = vpop.xlane.xlu0 %1661
          %1663 = vmax.xlane.f32.xlu0 %v1625
          %v1664 = vpop.xlane.xlu0 %1663
          %1665 = vmax.xlane.f32.xlu0 %v1626
          %v1666 = vpop.xlane.xlu0 %1665
          %1667 = vmax.xlane.f32.xlu0 %v1627
          %v1668 = vpop.xlane.xlu0 %1667
          %1669 = vmax.xlane.f32.xlu0 %v1628
          %v1670 = vpop.xlane.xlu0 %1669
          %1671 = vmax.xlane.f32.xlu0 %v1629
          %v1672 = vpop.xlane.xlu0 %1671
          %1673 = vmax.xlane.f32.xlu0 %v1630
          %v1674 = vpop.xlane.xlu0 %1673
          %1675 = vmax.xlane.f32.xlu0 %v1631
          %v1676 = vpop.xlane.xlu0 %1675
          %1677 = vmax.xlane.f32.xlu0 %v1632
          %v1678 = vpop.xlane.xlu0 %1677
          %1679 = vmax.xlane.f32.xlu0 %v1633
          %v1680 = vpop.xlane.xlu0 %1679
          %1681 = vmax.xlane.f32.xlu0 %v1634
          %v1682 = vpop.xlane.xlu0 %1681
          %1683 = vmax.xlane.f32.xlu0 %v1635
          %v1684 = vpop.xlane.xlu0 %1683
          %1685 = vmax.xlane.f32.xlu0 %v1636
          %v1686 = vpop.xlane.xlu0 %1685
          %1687 = vmax.xlane.f32.xlu0 %v1637
          %v1688 = vpop.xlane.xlu0 %1687
          %1689 = vmax.xlane.f32.xlu0 %v1638
          %v1690 = vpop.xlane.xlu0 %1689
          %1691 = vmax.xlane.f32.xlu0 %v1639
          %v1692 = vpop.xlane.xlu0 %1691
          %1693 = vmax.xlane.f32.xlu0 %v1640
          %v1694 = vpop.xlane.xlu0 %1693
          %1695 = vmax.xlane.f32.xlu0 %v1641
          %v1696 = vpop.xlane.xlu0 %1695
          %1697 = vmax.xlane.f32.xlu0 %v1642
          %v1698 = vpop.xlane.xlu0 %1697
          %1699 = vmax.xlane.f32.xlu0 %v1643
          %v1700 = vpop.xlane.xlu0 %1699
          %1701 = vmax.xlane.f32.xlu0 %v1644
          %v1702 = vpop.xlane.xlu0 %1701
          %1703 = vmax.xlane.f32.xlu0 %v1645
          %v1704 = vpop.xlane.xlu0 %1703
          %1705 = vmax.xlane.f32.xlu0 %v1646
          %v1706 = vpop.xlane.xlu0 %1705
          %1707 = vmax.xlane.f32.xlu0 %v1647
          %v1708 = vpop.xlane.xlu0 %1707
          %1709 = vmax.xlane.f32.xlu0 %v1648
          %v1710 = vpop.xlane.xlu0 %1709
          %1711 = vmax.xlane.f32.xlu0 %v1649
          %v1712 = vpop.xlane.xlu0 %1711
          %1713 = vmax.xlane.f32.xlu0 %v1650
          %v1714 = vpop.xlane.xlu0 %1713
          %v1715 = vmax.f32 %v1652, %v1684
          %v1716 = vmax.f32 %v1654, %v1686
          %v1717 = vmax.f32 %v1656, %v1688
          %v1718 = vmax.f32 %v1658, %v1690
          %v1719 = vmax.f32 %v1660, %v1692
          %v1720 = vmax.f32 %v1662, %v1694
          %v1721 = vmax.f32 %v1664, %v1696
          %v1722 = vmax.f32 %v1666, %v1698
          %v1723 = vmax.f32 %v1668, %v1700
          %v1724 = vmax.f32 %v1670, %v1702
          %v1725 = vmax.f32 %v1672, %v1704
          %v1726 = vmax.f32 %v1674, %v1706
          %v1727 = vmax.f32 %v1676, %v1708
          %v1728 = vmax.f32 %v1678, %v1710
          %v1729 = vmax.f32 %v1680, %v1712
          %v1730 = vmax.f32 %v1682, %v1714
          %v1731 = vmax.f32 %v1715, 1e-05
          %v1732 = vmax.f32 %v1716, 1e-05
          %v1733 = vmax.f32 %v1717, 1e-05
          %v1734 = vmax.f32 %v1718, 1e-05
          %v1735 = vmax.f32 %v1719, 1e-05
          %v1736 = vmax.f32 %v1720, 1e-05
          %v1737 = vmax.f32 %v1721, 1e-05
          %v1738 = vmax.f32 %v1722, 1e-05
          %v1739 = vmax.f32 %v1723, 1e-05
          %v1740 = vmax.f32 %v1724, 1e-05
          %v1741 = vmax.f32 %v1725, 1e-05
          %v1742 = vmax.f32 %v1726, 1e-05
          %v1743 = vmax.f32 %v1727, 1e-05
          %v1744 = vmax.f32 %v1728, 1e-05
          %v1745 = vmax.f32 %v1729, 1e-05
          %v1746 = vmax.f32 %v1730, 1e-05
          %v1747 = vrcp.pop %v1731
          %v1748 = vmul.f32 127.0, %v1747
          %v1749 = vrcp.pop %v1732
          %v1750 = vmul.f32 127.0, %v1749
          %v1751 = vrcp.pop %v1733
          %v1752 = vmul.f32 127.0, %v1751
          %v1753 = vrcp.pop %v1734
          %v1754 = vmul.f32 127.0, %v1753
          %v1755 = vrcp.pop %v1735
          %v1756 = vmul.f32 127.0, %v1755
          %v1757 = vrcp.pop %v1736
          %v1758 = vmul.f32 127.0, %v1757
          %v1759 = vrcp.pop %v1737
          %v1760 = vmul.f32 127.0, %v1759
          %v1761 = vrcp.pop %v1738
          %v1762 = vmul.f32 127.0, %v1761
          %v1763 = vrcp.pop %v1739
          %v1764 = vmul.f32 127.0, %v1763
          %v1765 = vrcp.pop %v1740
          %v1766 = vmul.f32 127.0, %v1765
          %v1767 = vrcp.pop %v1741
          %v1768 = vmul.f32 127.0, %v1767
          %v1769 = vrcp.pop %v1742
          %v1770 = vmul.f32 127.0, %v1769
          %v1771 = vrcp.pop %v1743
          %v1772 = vmul.f32 127.0, %v1771
          %v1773 = vrcp.pop %v1744
          %v1774 = vmul.f32 127.0, %v1773
          %v1775 = vrcp.pop %v1745
          %v1776 = vmul.f32 127.0, %v1775
          %v1777 = vrcp.pop %v1746
          %v1778 = vmul.f32 127.0, %v1777
          %v1779 = vmul.f32 %v1587, %v1748
          %v1780 = vmul.f32 %v1588, %v1750
          %v1781 = vmul.f32 %v1589, %v1752
          %v1782 = vmul.f32 %v1590, %v1754
          %v1783 = vmul.f32 %v1591, %v1756
          %v1784 = vmul.f32 %v1592, %v1758
          %v1785 = vmul.f32 %v1593, %v1760
          %v1786 = vmul.f32 %v1594, %v1762
          %v1787 = vmul.f32 %v1595, %v1764
          %v1788 = vmul.f32 %v1596, %v1766
          %v1789 = vmul.f32 %v1597, %v1768
          %v1790 = vmul.f32 %v1598, %v1770
          %v1791 = vmul.f32 %v1599, %v1772
          %v1792 = vmul.f32 %v1600, %v1774
          %v1793 = vmul.f32 %v1601, %v1776
          %v1794 = vmul.f32 %v1602, %v1778
          %v1795 = vmul.f32 %v1603, %v1748
          %v1796 = vmul.f32 %v1604, %v1750
          %v1797 = vmul.f32 %v1605, %v1752
          %v1798 = vmul.f32 %v1606, %v1754
          %v1799 = vmul.f32 %v1607, %v1756
          %v1800 = vmul.f32 %v1608, %v1758
          %v1801 = vmul.f32 %v1609, %v1760
          %v1802 = vmul.f32 %v1610, %v1762
          %v1803 = vmul.f32 %v1611, %v1764
          %v1804 = vmul.f32 %v1612, %v1766
          %v1805 = vmul.f32 %v1613, %v1768
          %v1806 = vmul.f32 %v1614, %v1770
          %v1807 = vmul.f32 %v1615, %v1772
          %v1808 = vmul.f32 %v1616, %v1774
          %v1809 = vmul.f32 %v1617, %v1776
          %v1810 = vmul.f32 %v1618, %v1778
          %v1811 = vround.ne.pseudo %v1779
          %v1812 = vround.ne.pseudo %v1780
          %v1813 = vround.ne.pseudo %v1781
          %v1814 = vround.ne.pseudo %v1782
          %v1815 = vround.ne.pseudo %v1783
          %v1816 = vround.ne.pseudo %v1784
          %v1817 = vround.ne.pseudo %v1785
          %v1818 = vround.ne.pseudo %v1786
          %v1819 = vround.ne.pseudo %v1787
          %v1820 = vround.ne.pseudo %v1788
          %v1821 = vround.ne.pseudo %v1789
          %v1822 = vround.ne.pseudo %v1790
          %v1823 = vround.ne.pseudo %v1791
          %v1824 = vround.ne.pseudo %v1792
          %v1825 = vround.ne.pseudo %v1793
          %v1826 = vround.ne.pseudo %v1794
          %v1827 = vround.ne.pseudo %v1795
          %v1828 = vround.ne.pseudo %v1796
          %v1829 = vround.ne.pseudo %v1797
          %v1830 = vround.ne.pseudo %v1798
          %v1831 = vround.ne.pseudo %v1799
          %v1832 = vround.ne.pseudo %v1800
          %v1833 = vround.ne.pseudo %v1801
          %v1834 = vround.ne.pseudo %v1802
          %v1835 = vround.ne.pseudo %v1803
          %v1836 = vround.ne.pseudo %v1804
          %v1837 = vround.ne.pseudo %v1805
          %v1838 = vround.ne.pseudo %v1806
          %v1839 = vround.ne.pseudo %v1807
          %v1840 = vround.ne.pseudo %v1808
          %v1841 = vround.ne.pseudo %v1809
          %v1842 = vround.ne.pseudo %v1810
          %v1843 = vmax.f32 %v1811, -128.0
          %v1844 = vmax.f32 %v1812, -128.0
          %v1845 = vmax.f32 %v1813, -128.0
          %v1846 = vmax.f32 %v1814, -128.0
          %v1847 = vmax.f32 %v1815, -128.0
          %v1848 = vmax.f32 %v1816, -128.0
          %v1849 = vmax.f32 %v1817, -128.0
          %v1850 = vmax.f32 %v1818, -128.0
          %v1851 = vmax.f32 %v1819, -128.0
          %v1852 = vmax.f32 %v1820, -128.0
          %v1853 = vmax.f32 %v1821, -128.0
          %v1854 = vmax.f32 %v1822, -128.0
          %v1855 = vmax.f32 %v1823, -128.0
          %v1856 = vmax.f32 %v1824, -128.0
          %v1857 = vmax.f32 %v1825, -128.0
          %v1858 = vmax.f32 %v1826, -128.0
          %v1859 = vmax.f32 %v1827, -128.0
          %v1860 = vmax.f32 %v1828, -128.0
          %v1861 = vmax.f32 %v1829, -128.0
          %v1862 = vmax.f32 %v1830, -128.0
          %v1863 = vmax.f32 %v1831, -128.0
          %v1864 = vmax.f32 %v1832, -128.0
          %v1865 = vmax.f32 %v1833, -128.0
          %v1866 = vmax.f32 %v1834, -128.0
          %v1867 = vmax.f32 %v1835, -128.0
          %v1868 = vmax.f32 %v1836, -128.0
          %v1869 = vmax.f32 %v1837, -128.0
          %v1870 = vmax.f32 %v1838, -128.0
          %v1871 = vmax.f32 %v1839, -128.0
          %v1872 = vmax.f32 %v1840, -128.0
          %v1873 = vmax.f32 %v1841, -128.0
          %v1874 = vmax.f32 %v1842, -128.0
          %v1875 = vmin.f32 %v1843, 127.0
          %v1876 = vmin.f32 %v1844, 127.0
          %v1877 = vmin.f32 %v1845, 127.0
          %v1878 = vmin.f32 %v1846, 127.0
          %v1879 = vmin.f32 %v1847, 127.0
          %v1880 = vmin.f32 %v1848, 127.0
          %v1881 = vmin.f32 %v1849, 127.0
          %v1882 = vmin.f32 %v1850, 127.0
          %v1883 = vmin.f32 %v1851, 127.0
          %v1884 = vmin.f32 %v1852, 127.0
          %v1885 = vmin.f32 %v1853, 127.0
          %v1886 = vmin.f32 %v1854, 127.0
          %v1887 = vmin.f32 %v1855, 127.0
          %v1888 = vmin.f32 %v1856, 127.0
          %v1889 = vmin.f32 %v1857, 127.0
          %v1890 = vmin.f32 %v1858, 127.0
          %v1891 = vmin.f32 %v1859, 127.0
          %v1892 = vmin.f32 %v1860, 127.0
          %v1893 = vmin.f32 %v1861, 127.0
          %v1894 = vmin.f32 %v1862, 127.0
          %v1895 = vmin.f32 %v1863, 127.0
          %v1896 = vmin.f32 %v1864, 127.0
          %v1897 = vmin.f32 %v1865, 127.0
          %v1898 = vmin.f32 %v1866, 127.0
          %v1899 = vmin.f32 %v1867, 127.0
          %v1900 = vmin.f32 %v1868, 127.0
          %v1901 = vmin.f32 %v1869, 127.0
          %v1902 = vmin.f32 %v1870, 127.0
          %v1903 = vmin.f32 %v1871, 127.0
          %v1904 = vmin.f32 %v1872, 127.0
          %v1905 = vmin.f32 %v1873, 127.0
          %v1906 = vmin.f32 %v1874, 127.0
          %v1907 = vpack.c.bf16 %v1876, %v1875
          %v1908 = vpack.c.bf16 %v1878, %v1877
          %v1909 = vpack.c.bf16 %v1880, %v1879
          %v1910 = vpack.c.bf16 %v1882, %v1881
          %v1911 = vpack.c.bf16 %v1884, %v1883
          %v1912 = vpack.c.bf16 %v1886, %v1885
          %v1913 = vpack.c.bf16 %v1888, %v1887
          %v1914 = vpack.c.bf16 %v1890, %v1889
          %v1915 = vpack.c.bf16 %v1892, %v1891
          %v1916 = vpack.c.bf16 %v1894, %v1893
          %v1917 = vpack.c.bf16 %v1896, %v1895
          %v1918 = vpack.c.bf16 %v1898, %v1897
          %v1919 = vpack.c.bf16 %v1900, %v1899
          %v1920 = vpack.c.bf16 %v1902, %v1901
          %v1921 = vpack.c.bf16 %v1904, %v1903
          %v1922 = vpack.c.bf16 %v1906, %v1905
          %1923 = vst [vmem:[#allocation5] sm:$0xff] %v1907
          %1924 = vst [vmem:[#allocation5 + $0x8] sm:$0xff] %v1908
          %1925 = vst [vmem:[#allocation5 + $0x10] sm:$0xff] %v1909
          %1926 = vst [vmem:[#allocation5 + $0x18] sm:$0xff] %v1910
          %1927 = vst [vmem:[#allocation5 + $0x20] sm:$0xff] %v1911
          %1928 = vst [vmem:[#allocation5 + $0x28] sm:$0xff] %v1912
          %1929 = vst [vmem:[#allocation5 + $0x30] sm:$0xff] %v1913
          %1930 = vst [vmem:[#allocation5 + $0x38] sm:$0xff] %v1914
          %1931 = vst [vmem:[#allocation5 + $0x40] sm:$0xff] %v1915
          %1932 = vst [vmem:[#allocation5 + $0x48] sm:$0xff] %v1916
          %1933 = vst [vmem:[#allocation5 + $0x50] sm:$0xff] %v1917
          %1934 = vst [vmem:[#allocation5 + $0x58] sm:$0xff] %v1918
          %1935 = vst [vmem:[#allocation5 + $0x60] sm:$0xff] %v1919
          %1936 = vst [vmem:[#allocation5 + $0x68] sm:$0xff] %v1920
          %1937 = vst [vmem:[#allocation5 + $0x70] sm:$0xff] %v1921
          %1938 = vst [vmem:[#allocation5 + $0x78] sm:$0xff] %v1922
          %vm1939 = vcmask 7168
          %1940 = vst.msk [vmem:[#allocation6] sm:$0xff] %vm1939, %v1731
          %1941 = vst.msk [vmem:[#allocation6 + $0x8] sm:$0xff] %vm1939, %v1732
          %1942 = vst.msk [vmem:[#allocation6 + $0x10] sm:$0xff] %vm1939, %v1733
          %1943 = vst.msk [vmem:[#allocation6 + $0x18] sm:$0xff] %vm1939, %v1734
          %1944 = vst.msk [vmem:[#allocation6 + $0x20] sm:$0xff] %vm1939, %v1735
          %1945 = vst.msk [vmem:[#allocation6 + $0x28] sm:$0xff] %vm1939, %v1736
          %1946 = vst.msk [vmem:[#allocation6 + $0x30] sm:$0xff] %vm1939, %v1737
          %1947 = vst.msk [vmem:[#allocation6 + $0x38] sm:$0xff] %vm1939, %v1738
          %1948 = vst.msk [vmem:[#allocation6 + $0x40] sm:$0xff] %vm1939, %v1739
          %1949 = vst.msk [vmem:[#allocation6 + $0x48] sm:$0xff] %vm1939, %v1740
          %1950 = vst.msk [vmem:[#allocation6 + $0x50] sm:$0xff] %vm1939, %v1741
          %1951 = vst.msk [vmem:[#allocation6 + $0x58] sm:$0xff] %vm1939, %v1742
          %1952 = vst.msk [vmem:[#allocation6 + $0x60] sm:$0xff] %vm1939, %v1743
          %1953 = vst.msk [vmem:[#allocation6 + $0x68] sm:$0xff] %vm1939, %v1744
          %1954 = vst.msk [vmem:[#allocation6 + $0x70] sm:$0xff] %vm1939, %v1745
          %1955 = vst.msk [vmem:[#allocation6 + $0x78] sm:$0xff] %vm1939, %v1746
        $region64: #{tpu_custom_call.1} parent=47 // pred_fallthru
          _
        %p1956 = scmp.ge.s32.totalorder %s25, 2
        // Predicated region
        $region65: #{tpu_custom_call.1} parent=47 // pred_check
          %p1957 = pneg %p1956
        $region66: #{tpu_custom_call.1} parent=47 // pred_check_branch
          %1959 = sbr.rel (%p1957) target = $region68
        $region67: #{tpu_custom_call.1} parent=47 // pred_region
          %s1960 = ssub.s32 %s25, 2
          %v1961 = vld [vmem:[#allocation7] sm:$0xff]
          %v1962 = vld [vmem:[#allocation7 + $0x8] sm:$0xff]
          %v1963 = vld [vmem:[#allocation7 + $0x10] sm:$0xff]
          %v1964 = vld [vmem:[#allocation7 + $0x18] sm:$0xff]
          %v1965 = vld [vmem:[#allocation7 + $0x20] sm:$0xff]
          %v1966 = vld [vmem:[#allocation7 + $0x28] sm:$0xff]
          %v1967 = vld [vmem:[#allocation7 + $0x30] sm:$0xff]
          %v1968 = vld [vmem:[#allocation7 + $0x38] sm:$0xff]
          %v1969 = vld [vmem:[#allocation7 + $0x40] sm:$0xff]
          %v1970 = vld [vmem:[#allocation7 + $0x48] sm:$0xff]
          %v1971 = vld [vmem:[#allocation7 + $0x50] sm:$0xff]
          %v1972 = vld [vmem:[#allocation7 + $0x58] sm:$0xff]
          %v1973 = vld [vmem:[#allocation7 + $0x60] sm:$0xff]
          %v1974 = vld [vmem:[#allocation7 + $0x68] sm:$0xff]
          %v1975 = vld [vmem:[#allocation7 + $0x70] sm:$0xff]
          %v1976 = vld [vmem:[#allocation7 + $0x78] sm:$0xff]
          %s1977 = smul.u32 %s1960, 8
          %s1978 = smul.addr %s1977, 8
          %s1979 = scalar_lea.vmem [#allocation5], %s1978
          %v1980 = vld [vmem:[%s1979] sm:$0xff]
          %v1981 = vld [vmem:[%s1979 + $0x8] sm:$0xff]
          %v1982 = vld [vmem:[%s1979 + $0x10] sm:$0xff]
          %v1983 = vld [vmem:[%s1979 + $0x18] sm:$0xff]
          %v1984 = vld [vmem:[%s1979 + $0x20] sm:$0xff]
          %v1985 = vld [vmem:[%s1979 + $0x28] sm:$0xff]
          %v1986 = vld [vmem:[%s1979 + $0x30] sm:$0xff]
          %v1987 = vld [vmem:[%s1979 + $0x38] sm:$0xff]
          %v1988 = vld [vmem:[%s408] sm:$0xff]
          %v1989 = vld [vmem:[%s408 + $0x8] sm:$0xff]
          %v1990 = vld [vmem:[%s408 + $0x10] sm:$0xff]
          %v1991 = vld [vmem:[%s408 + $0x18] sm:$0xff]
          %v1992 = vunpack.c.l.s8.bf16 %v1988
          %v1993 = vunpack.c.h.s8.bf16 %v1988
          %v1994 = vunpack.c.l.s8.bf16 %v1989
          %v1995 = vunpack.c.h.s8.bf16 %v1989
          %v1996 = vunpack.c.l.s8.bf16 %v1990
          %v1997 = vunpack.c.h.s8.bf16 %v1990
          %v1998 = vunpack.c.l.s8.bf16 %v1991
          %v1999 = vunpack.c.h.s8.bf16 %v1991
          %2000 = vmatprep.subr.bf16.mxu0 0
          %2001 = vmatpush1.bf16.msra.mxu0 %v1992
          %2002 = vmatprep.subr.bf16.mxu0 0
          %2003 = vmatpush1.bf16.msra.mxu0 %v1993
          %2004 = vmatprep.subr.bf16.mxu0 0
          %2005 = vmatpush1.bf16.msra.mxu0 %v1994
          %2006 = vmatprep.subr.bf16.mxu0 0
          %2007 = vmatpush1.bf16.msra.mxu0 %v1995
          %2008 = vmatprep.subr.bf16.mxu0 0
          %2009 = vmatpush1.bf16.msra.mxu0 %v1996
          %2010 = vmatprep.subr.bf16.mxu0 0
          %2011 = vmatpush1.bf16.msra.mxu0 %v1997
          %2012 = vmatprep.subr.bf16.mxu0 0
          %2013 = vmatpush1.bf16.msra.mxu0 %v1998
          %2014 = vmatprep.subr.bf16.mxu0 0
          %2015 = vmatpush1.bf16.msra.mxu0 %v1999
          %2016 = vmatprep.subr.bf16.mxu0 0
          %2017 = vmatpush1.bf16.msra.mxu0 0
          %2018 = vmatprep.subr.bf16.mxu0 0
          %2019 = vmatpush1.bf16.msra.mxu0 0
          %2020 = vmatprep.subr.bf16.mxu0 0
          %2021 = vmatpush1.bf16.msra.mxu0 0
          %2022 = vmatprep.subr.bf16.mxu0 0
          %2023 = vmatpush1.bf16.msra.mxu0 0
          %2024 = vmatprep.subr.bf16.mxu0 0
          %2025 = vmatpush1.bf16.msra.mxu0 0
          %2026 = vmatprep.subr.bf16.mxu0 0
          %2027 = vmatpush1.bf16.msra.mxu0 0
          %2028 = vmatprep.subr.bf16.mxu0 0
          %2029 = vmatpush1.bf16.msra.mxu0 0
          %2030 = vmatprep.subr.bf16.mxu0 0
          %2031 = vmatpush1.bf16.msra.mxu0 0
          %2032 = vmatprep.mubr.bf16.mxu0 0
          %2033 = vmatmul.mubr.bf16.gmra.mrb[0].mxu0 %v1980
          %v2034 = vpop.f32.mrb[0].mxu0
          %v2035 = vadd.f32 0.0, %v2034
          %v2036 = vpop.f32.mrb[0].mxu0
          %v2037 = vpop.f32.mrb[0].mxu0
          %v2038 = vadd.f32 0.0, %v2037
          %v2039 = vpop.f32.mrb[0].mxu0
          %2040 = vmatprep.mubr.bf16.mxu0 0
          %2041 = vmatmul.mubr.bf16.gmra.mrb[0].mxu0 %v1981
          %v2042 = vpop.f32.mrb[0].mxu0
          %v2043 = vadd.f32 0.0, %v2042
          %v2044 = vpop.f32.mrb[0].mxu0
          %v2045 = vpop.f32.mrb[0].mxu0
          %v2046 = vadd.f32 0.0, %v2045
          %v2047 = vpop.f32.mrb[0].mxu0
          %2048 = vmatprep.mubr.bf16.mxu0 0
          %2049 = vmatmul.mubr.bf16.gmra.mrb[0].mxu0 %v1982
          %v2050 = vpop.f32.mrb[0].mxu0
          %v2051 = vadd.f32 0.0, %v2050
          %v2052 = vpop.f32.mrb[0].mxu0
          %v2053 = vpop.f32.mrb[0].mxu0
          %v2054 = vadd.f32 0.0, %v2053
          %v2055 = vpop.f32.mrb[0].mxu0
          %2056 = vmatprep.mubr.bf16.mxu0 0
          %2057 = vmatmul.mubr.bf16.gmra.mrb[0].mxu0 %v1983
          %v2058 = vpop.f32.mrb[0].mxu0
          %v2059 = vadd.f32 0.0, %v2058
          %v2060 = vpop.f32.mrb[0].mxu0
          %v2061 = vpop.f32.mrb[0].mxu0
          %v2062 = vadd.f32 0.0, %v2061
          %v2063 = vpop.f32.mrb[0].mxu0
          %2064 = vmatprep.mubr.bf16.mxu0 0
          %2065 = vmatmul.mubr.bf16.gmra.mrb[0].mxu0 %v1984
          %v2066 = vpop.f32.mrb[0].mxu0
          %v2067 = vadd.f32 0.0, %v2066
          %v2068 = vpop.f32.mrb[0].mxu0
          %v2069 = vpop.f32.mrb[0].mxu0
          %v2070 = vadd.f32 0.0, %v2069
          %v2071 = vpop.f32.mrb[0].mxu0
          %2072 = vmatprep.mubr.bf16.mxu0 0
          %2073 = vmatmul.mubr.bf16.gmra.mrb[0].mxu0 %v1985
          %v2074 = vpop.f32.mrb[0].mxu0
          %v2075 = vadd.f32 0.0, %v2074
          %v2076 = vpop.f32.mrb[0].mxu0
          %v2077 = vpop.f32.mrb[0].mxu0
          %v2078 = vadd.f32 0.0, %v2077
          %v2079 = vpop.f32.mrb[0].mxu0
          %2080 = vmatprep.mubr.bf16.mxu0 0
          %2081 = vmatmul.mubr.bf16.gmra.mrb[0].mxu0 %v1986
          %v2082 = vpop.f32.mrb[0].mxu0
          %v2083 = vadd.f32 0.0, %v2082
          %v2084 = vpop.f32.mrb[0].mxu0
          %v2085 = vpop.f32.mrb[0].mxu0
          %v2086 = vadd.f32 0.0, %v2085
          %v2087 = vpop.f32.mrb[0].mxu0
          %2088 = vmatprep.mubr.bf16.mxu0 0
          %2089 = vmatmul.mubr.bf16.gmra.mrb[0].mxu0 %v1987
          %v2090 = vpop.f32.mrb[0].mxu0
          %v2091 = vadd.f32 0.0, %v2090
          %v2092 = vpop.f32.mrb[0].mxu0
          %v2093 = vpop.f32.mrb[0].mxu0
          %v2094 = vadd.f32 0.0, %v2093
          %v2095 = vpop.f32.mrb[0].mxu0
          %2096 = vdwg.mxu0
          %v2097 = vadd.f32 %v1961, %v2035
          %v2098 = vadd.f32 %v1962, %v2038
          %v2099 = vadd.f32 %v1963, %v2043
          %v2100 = vadd.f32 %v1964, %v2046
          %v2101 = vadd.f32 %v1965, %v2051
          %v2102 = vadd.f32 %v1966, %v2054
          %v2103 = vadd.f32 %v1967, %v2059
          %v2104 = vadd.f32 %v1968, %v2062
          %v2105 = vadd.f32 %v1969, %v2067
          %v2106 = vadd.f32 %v1970, %v2070
          %v2107 = vadd.f32 %v1971, %v2075
          %v2108 = vadd.f32 %v1972, %v2078
          %v2109 = vadd.f32 %v1973, %v2083
          %v2110 = vadd.f32 %v1974, %v2086
          %v2111 = vadd.f32 %v1975, %v2091
          %v2112 = vadd.f32 %v1976, %v2094
          %vm2113 = vcmask 261120
          %2114 = vst.msk [vmem:[#allocation7] sm:$0xff] %vm2113, %v2097
          %2115 = vst.msk [vmem:[#allocation7 + $0x8] sm:$0xff] %vm2113, %v2098
          %2116 = vst.msk [vmem:[#allocation7 + $0x10] sm:$0xff] %vm2113, %v2099
          %2117 = vst.msk [vmem:[#allocation7 + $0x18] sm:$0xff] %vm2113, %v2100
          %2118 = vst.msk [vmem:[#allocation7 + $0x20] sm:$0xff] %vm2113, %v2101
          %2119 = vst.msk [vmem:[#allocation7 + $0x28] sm:$0xff] %vm2113, %v2102
          %2120 = vst.msk [vmem:[#allocation7 + $0x30] sm:$0xff] %vm2113, %v2103
          %2121 = vst.msk [vmem:[#allocation7 + $0x38] sm:$0xff] %vm2113, %v2104
          %2122 = vst.msk [vmem:[#allocation7 + $0x40] sm:$0xff] %vm2113, %v2105
          %2123 = vst.msk [vmem:[#allocation7 + $0x48] sm:$0xff] %vm2113, %v2106
          %2124 = vst.msk [vmem:[#allocation7 + $0x50] sm:$0xff] %vm2113, %v2107
          %2125 = vst.msk [vmem:[#allocation7 + $0x58] sm:$0xff] %vm2113, %v2108
          %2126 = vst.msk [vmem:[#allocation7 + $0x60] sm:$0xff] %vm2113, %v2109
          %2127 = vst.msk [vmem:[#allocation7 + $0x68] sm:$0xff] %vm2113, %v2110
          %2128 = vst.msk [vmem:[#allocation7 + $0x70] sm:$0xff] %vm2113, %v2111
          %2129 = vst.msk [vmem:[#allocation7 + $0x78] sm:$0xff] %vm2113, %v2112
        $region68: #{tpu_custom_call.1} parent=47 // pred_fallthru
          _
        %p2130 = scmp.eq.s32.totalorder %s25, 3
        // Predicated region
        $region69: #{tpu_custom_call.1} parent=47 // pred_check
          %p2131 = pneg %p2130
        $region70: #{tpu_custom_call.1} parent=47 // pred_check_branch
          %2133 = sbr.rel (%p2131) target = $region72
        $region71: #{tpu_custom_call.1} parent=47 // pred_region
          %v2134 = vld [vmem:[#allocation7] sm:$0xff]
          %v2135 = vld [vmem:[#allocation7 + $0x8] sm:$0xff]
          %v2136 = vld [vmem:[#allocation7 + $0x10] sm:$0xff]
          %v2137 = vld [vmem:[#allocation7 + $0x18] sm:$0xff]
          %v2138 = vld [vmem:[#allocation7 + $0x20] sm:$0xff]
          %v2139 = vld [vmem:[#allocation7 + $0x28] sm:$0xff]
          %v2140 = vld [vmem:[#allocation7 + $0x30] sm:$0xff]
          %v2141 = vld [vmem:[#allocation7 + $0x38] sm:$0xff]
          %v2142 = vld [vmem:[#allocation7 + $0x40] sm:$0xff]
          %v2143 = vld [vmem:[#allocation7 + $0x48] sm:$0xff]
          %v2144 = vld [vmem:[#allocation7 + $0x50] sm:$0xff]
          %v2145 = vld [vmem:[#allocation7 + $0x58] sm:$0xff]
          %v2146 = vld [vmem:[#allocation7 + $0x60] sm:$0xff]
          %v2147 = vld [vmem:[#allocation7 + $0x68] sm:$0xff]
          %v2148 = vld [vmem:[#allocation7 + $0x70] sm:$0xff]
          %v2149 = vld [vmem:[#allocation7 + $0x78] sm:$0xff]
          %v2150 = vld [vmem:[#allocation6] sm:$0xff]
          %v2151 = vld [vmem:[#allocation6 + $0x8] sm:$0xff]
          %v2152 = vld [vmem:[#allocation6 + $0x10] sm:$0xff]
          %v2153 = vld [vmem:[#allocation6 + $0x18] sm:$0xff]
          %v2154 = vld [vmem:[#allocation6 + $0x20] sm:$0xff]
          %v2155 = vld [vmem:[#allocation6 + $0x28] sm:$0xff]
          %v2156 = vld [vmem:[#allocation6 + $0x30] sm:$0xff]
          %v2157 = vld [vmem:[#allocation6 + $0x38] sm:$0xff]
          %v2158 = vld [vmem:[#allocation6 + $0x40] sm:$0xff]
          %v2159 = vld [vmem:[#allocation6 + $0x48] sm:$0xff]
          %v2160 = vld [vmem:[#allocation6 + $0x50] sm:$0xff]
          %v2161 = vld [vmem:[#allocation6 + $0x58] sm:$0xff]
          %v2162 = vld [vmem:[#allocation6 + $0x60] sm:$0xff]
          %v2163 = vld [vmem:[#allocation6 + $0x68] sm:$0xff]
          %v2164 = vld [vmem:[#allocation6 + $0x70] sm:$0xff]
          %v2165 = vld [vmem:[#allocation6 + $0x78] sm:$0xff]
          %s2166 = sld [smem:[#allocation8 + $0x1]]
          %v2167 = vstv %s2166
          %v2168 = vmul.f32 %v2150, %v2167
          %v2169 = vmul.f32 %v2151, %v2167
          %v2170 = vmul.f32 %v2152, %v2167
          %v2171 = vmul.f32 %v2153, %v2167
          %v2172 = vmul.f32 %v2154, %v2167
          %v2173 = vmul.f32 %v2155, %v2167
          %v2174 = vmul.f32 %v2156, %v2167
          %v2175 = vmul.f32 %v2157, %v2167
          %v2176 = vmul.f32 %v2158, %v2167
          %v2177 = vmul.f32 %v2159, %v2167
          %v2178 = vmul.f32 %v2160, %v2167
          %v2179 = vmul.f32 %v2161, %v2167
          %v2180 = vmul.f32 %v2162, %v2167
          %v2181 = vmul.f32 %v2163, %v2167
          %v2182 = vmul.f32 %v2164, %v2167
          %v2183 = vmul.f32 %v2165, %v2167
          %2185 = vset.pattern.permute.xlu0 0
          %2186 = vperm.xlu0 %2185, %v2168
          %v2187 = vpop.permute.xlu0 %2186
          %2190 = vset.pattern.permute.xlu0 0
          %2191 = vperm.xlu0 %2190, %v2169
          %v2192 = vpop.permute.xlu0 %2191
          %2195 = vset.pattern.permute.xlu0 0
          %2196 = vperm.xlu0 %2195, %v2170
          %v2197 = vpop.permute.xlu0 %2196
          %2200 = vset.pattern.permute.xlu0 0
          %2201 = vperm.xlu0 %2200, %v2171
          %v2202 = vpop.permute.xlu0 %2201
          %2205 = vset.pattern.permute.xlu0 0
          %2206 = vperm.xlu0 %2205, %v2172
          %v2207 = vpop.permute.xlu0 %2206
          %2210 = vset.pattern.permute.xlu0 0
          %2211 = vperm.xlu0 %2210, %v2173
          %v2212 = vpop.permute.xlu0 %2211
          %2215 = vset.pattern.permute.xlu0 0
          %2216 = vperm.xlu0 %2215, %v2174
          %v2217 = vpop.permute.xlu0 %2216
          %2220 = vset.pattern.permute.xlu0 0
          %2221 = vperm.xlu0 %2220, %v2175
          %v2222 = vpop.permute.xlu0 %2221
          %2225 = vset.pattern.permute.xlu0 0
          %2226 = vperm.xlu0 %2225, %v2176
          %v2227 = vpop.permute.xlu0 %2226
          %2230 = vset.pattern.permute.xlu0 0
          %2231 = vperm.xlu0 %2230, %v2177
          %v2232 = vpop.permute.xlu0 %2231
          %2235 = vset.pattern.permute.xlu0 0
          %2236 = vperm.xlu0 %2235, %v2178
          %v2237 = vpop.permute.xlu0 %2236
          %2240 = vset.pattern.permute.xlu0 0
          %2241 = vperm.xlu0 %2240, %v2179
          %v2242 = vpop.permute.xlu0 %2241
          %2245 = vset.pattern.permute.xlu0 0
          %2246 = vperm.xlu0 %2245, %v2180
          %v2247 = vpop.permute.xlu0 %2246
          %2250 = vset.pattern.permute.xlu0 0
          %2251 = vperm.xlu0 %2250, %v2181
          %v2252 = vpop.permute.xlu0 %2251
          %2255 = vset.pattern.permute.xlu0 0
          %2256 = vperm.xlu0 %2255, %v2182
          %v2257 = vpop.permute.xlu0 %2256
          %2260 = vset.pattern.permute.xlu0 0
          %2261 = vperm.xlu0 %2260, %v2183
          %v2262 = vpop.permute.xlu0 %2261
          %v2264 = vmul.f32 %v2134, %v2187
          %v2265 = vmul.f32 %v2135, %v2192
          %v2266 = vmul.f32 %v2136, %v2197
          %v2267 = vmul.f32 %v2137, %v2202
          %v2268 = vmul.f32 %v2138, %v2207
          %v2269 = vmul.f32 %v2139, %v2212
          %v2270 = vmul.f32 %v2140, %v2217
          %v2271 = vmul.f32 %v2141, %v2222
          %v2272 = vmul.f32 %v2142, %v2227
          %v2273 = vmul.f32 %v2143, %v2232
          %v2274 = vmul.f32 %v2144, %v2237
          %v2275 = vmul.f32 %v2145, %v2242
          %v2276 = vmul.f32 %v2146, %v2247
          %v2277 = vmul.f32 %v2147, %v2252
          %v2278 = vmul.f32 %v2148, %v2257
          %v2279 = vmul.f32 %v2149, %v2262
          %vm2280 = vcmask 261120
          %2281 = vst.msk [vmem:[#allocation11] sm:$0xff] %vm2280, %v2264
          %2282 = vst.msk [vmem:[#allocation11 + $0x8] sm:$0xff] %vm2280, %v2265
          %2283 = vst.msk [vmem:[#allocation11 + $0x10] sm:$0xff] %vm2280, %v2266
          %2284 = vst.msk [vmem:[#allocation11 + $0x18] sm:$0xff] %vm2280, %v2267
          %2285 = vst.msk [vmem:[#allocation11 + $0x20] sm:$0xff] %vm2280, %v2268
          %2286 = vst.msk [vmem:[#allocation11 + $0x28] sm:$0xff] %vm2280, %v2269
          %2287 = vst.msk [vmem:[#allocation11 + $0x30] sm:$0xff] %vm2280, %v2270
          %2288 = vst.msk [vmem:[#allocation11 + $0x38] sm:$0xff] %vm2280, %v2271
          %2289 = vst.msk [vmem:[#allocation11 + $0x40] sm:$0xff] %vm2280, %v2272
          %2290 = vst.msk [vmem:[#allocation11 + $0x48] sm:$0xff] %vm2280, %v2273
          %2291 = vst.msk [vmem:[#allocation11 + $0x50] sm:$0xff] %vm2280, %v2274
          %2292 = vst.msk [vmem:[#allocation11 + $0x58] sm:$0xff] %vm2280, %v2275
          %2293 = vst.msk [vmem:[#allocation11 + $0x60] sm:$0xff] %vm2280, %v2276
          %2294 = vst.msk [vmem:[#allocation11 + $0x68] sm:$0xff] %vm2280, %v2277
          %2295 = vst.msk [vmem:[#allocation11 + $0x70] sm:$0xff] %vm2280, %v2278
          %2296 = vst.msk [vmem:[#allocation11 + $0x78] sm:$0xff] %vm2280, %v2279
        $region72: #{tpu_custom_call.1} parent=47 // pred_fallthru
          _
        // Predicated region
        $region73: #{tpu_custom_call.1} parent=47 // pred_check
          %p2297 = pneg %p231
        $region74: #{tpu_custom_call.1} parent=47 // pred_check_branch
          %2299 = sbr.rel (%p2297) target = $region76
        $region75: #{tpu_custom_call.1} parent=47 // pred_region
          %s2300 = smul.u32 16, %s24
          %s2301 = ssub.s32 2, %s2300
          %s2302 = smul.u32 128, %s2301
          %s2304 = ssub.s32 2048, %s2302
          %2305 = vsyncadd [#allocation9], %s2304
          %p2306 = scmp.ne.s32.totalorder 0, %s2302
          %s2307 = smul.addr %s2300, 128
          %s2308 = scalar_lea.hbm %s7, %s2307
          %s2309 = smul.u32 8, %s2301
          %s2310 = sshll.u32 [#allocation11], 4
          %s2311 = int_to_ptr.vmem [resolvable:$true] %s2310
          %s2312 = sshll.u32 %s2309, 4
          %2316 = dma.vmem_to_hbm [thread:$0]  (%p2306), %s2311, %s2312, %s2308, [#allocation9], 128, 128, 8
        $region76: #{tpu_custom_call.1} parent=47 // pred_fallthru
          _
        // Predicated region
        $region77: #{tpu_custom_call.1} parent=47 // pred_check
          %p2317 = pneg %p231
        $region78: #{tpu_custom_call.1} parent=47 // pred_check_branch
          %2319 = sbr.rel (%p2317) target = $region80
        $region79: #{tpu_custom_call.1} parent=47 // pred_region
          %2320 = dma.done [#allocation9], 2048
        $region80: #{tpu_custom_call.1} parent=47 // pred_fallthru
          _
      $region48: #{tpu_custom_call.1} parent=5 // pred_fallthru
        _
      %p2321 = scmp.le.s32.totalorder 2, %s15
      // Predicated region
      $region81: #{tpu_custom_call.1} parent=5 // pred_check
        %p2322 = pneg %p2321
      $region82: #{tpu_custom_call.1} parent=5 // pred_check_branch
        %2324 = sbr.rel (%p2322) target = $region84
      $region83: #{tpu_custom_call.1} parent=5 // pred_region
        %s2325 = ssub.s32 %s15, 2
      $region84: #{tpu_custom_call.1} parent=5 // pred_fallthru
        _
    $region6: #{tpu_custom_call.1} parent=1 // loop_footer
      %s19 = sadd.s32 1, %s15
    $region7: #{tpu_custom_call.1} parent=1 // loop_footer_branch
      %14 = sbr.rel target = $region3
    $region8: #{tpu_custom_call.1} parent=1 // loop_exit
      _
    %2326 = vsyncpa [#allocation9], 1
    %s2327 = scalar_lea.sflag [#allocation9], 1
    %2328 = vsyncpa %s2327, 1
    %2329 = vsyncpa [#allocation10], 1
    %s2330 = scalar_lea.sflag [#allocation10], 1
    %2331 = vsyncpa %s2330, 1

</llo_original>
